<compile_context>
chip_gen: v7x
topology: tpu7x:2x2x1
jax: 0.10.0
libtpu: 0.0.40
codegen_flags: <defaults>
</compile_context>

<pallas_src>
import math
import functools

import jax
import jax.numpy as jnp
from jax.experimental import pallas as pl
from jax.experimental.pallas import tpu as pltpu


def _csa_kernel(x_ref, wq_ref, wk_ref, wv_ref, wo_ref, o_ref,
                k_scr, v_scr, q_scr, y_scr, *,
                num_heads, head_dim, q_tile, kv_tile):
    """One grid step = one (batch, q-tile) pair.

    x_ref  : (1, T, E)   full sequence of this batch element (resident per b)
    wq/wk/wv/wo_ref : (E, E) bf16 weights (resident, constant index_map)
    o_ref  : (1, TQ, E)
    k_scr, v_scr : (H, T, hd)  bf16, persistent across the q-tile axis
    q_scr  : (H, TQ, hd) bf16  staging for the head-major Q of this tile
    y_scr  : (TQ, E)     f32   merged head outputs (replaces concatenate)
    """
    H, hd, TQ, TKV = num_heads, head_dim, q_tile, kv_tile
    T = x_ref.shape[1]
    num_kv = T // TKV
    scale = 1.0 / math.sqrt(hd)
    qi = pl.program_id(1)

    # ---- once per batch element: project K, V for the whole sequence into
    #      head-major bf16 scratch (reused by every q tile of this batch). ----
    @pl.when(qi == 0)
    def _project_kv():
        xf = x_ref[0].astype(jnp.bfloat16)                                      # (T, E)
        k_all = jnp.dot(xf, wk_ref[...], preferred_element_type=jnp.float32)    # (T, E) f32
        v_all = jnp.dot(xf, wv_ref[...], preferred_element_type=jnp.float32)
        for h in range(H):                       # full-slab stores only (no concat)
            sl = slice(h * hd, (h + 1) * hd)
            k_scr[h] = k_all[:, sl].astype(k_scr.dtype)
            v_scr[h] = v_all[:, sl].astype(v_scr.dtype)

    # ---- per q-tile: project Q (scale folded in), stage head-major. ----
    if TQ == T:
        xq = x_ref[0]
    else:
        row0 = pl.multiple_of(qi * TQ, TQ)
        xq = x_ref[0, pl.ds(row0, TQ), :]
    xq = xq.astype(jnp.bfloat16)                                                 # (TQ, E)
    q_all = jnp.dot(xq, wq_ref[...], preferred_element_type=jnp.float32) * scale
    for h in range(H):
        q_scr[h] = q_all[:, h * hd:(h + 1) * hd].astype(q_scr.dtype)
    q = q_scr[...]                                                               # (H, TQ, hd) bf16

    # ---- flash-style online softmax over kv tiles, all heads batched. ----
    m = jnp.full((H, TQ, 1), -jnp.inf, dtype=jnp.float32)
    l = jnp.zeros((H, TQ, 1), dtype=jnp.float32)
    acc = jnp.zeros((H, TQ, hd), dtype=jnp.float32)
    for i in range(num_kv):                      # static unroll; kv_tile kept large
        sl = slice(i * TKV, (i + 1) * TKV)
        kt = k_scr[:, sl, :]                                                     # (H, TKV, hd)
        vt = v_scr[:, sl, :]
        s = jnp.einsum("hqd,hkd->hqk", q, kt,
                       preferred_element_type=jnp.float32)                       # (H, TQ, TKV) f32
        m_new = jnp.maximum(m, jnp.max(s, axis=-1, keepdims=True))
        alpha = jnp.exp(m - m_new)
        p = jnp.exp(s - m_new)
        l = alpha * l + jnp.sum(p, axis=-1, keepdims=True)
        acc = alpha * acc + jnp.einsum("hqk,hkd->hqd", p.astype(vt.dtype), vt,
                                       preferred_element_type=jnp.float32)
        m = m_new

    # ---- normalize on the (H,TQ,hd) accumulator (EUP reciprocal), merge heads
    #      into an f32 staging slab, one lane-dense output projection. ----
    y = acc * pl.reciprocal(l, approx=True)                                      # (H, TQ, hd) f32
    for h in range(H):
        y_scr[:, h * hd:(h + 1) * hd] = y[h]                                     # f32 masked stores
    out = jnp.dot(y_scr[...].astype(jnp.bfloat16), wo_ref[...],
                  preferred_element_type=jnp.float32)                            # (TQ, E)
    o_ref[0] = out.astype(o_ref.dtype)


def causal_self_attention(x, w_attn_t, w_proj_t, *, num_heads,
                          q_tile=None, kv_tile=None):
    """x: (B, T, E); w_attn_t: (E, 3E) = W_attn^T; w_proj_t: (E, E) = W_proj^T."""
    B, T, E = x.shape
    assert E % num_heads == 0
    hd = E // num_heads

    if q_tile is None:
        q_tile = T if (T <= 128 or T % 128 != 0) else 128
    if kv_tile is None:
        kv_tile = T if (T <= 512 or T % 512 != 0) else 512
    assert T % q_tile == 0 and T % kv_tile == 0
    n_q = T // q_tile

    # Split the fused QKV weight and cast all weights to bf16 once (MXU operands);
    # accumulation inside the kernel stays f32.
    wq = w_attn_t[:, 0 * E:1 * E].astype(jnp.bfloat16)
    wk = w_attn_t[:, 1 * E:2 * E].astype(jnp.bfloat16)
    wv = w_attn_t[:, 2 * E:3 * E].astype(jnp.bfloat16)
    wo = w_proj_t.astype(jnp.bfloat16)

    kernel = functools.partial(_csa_kernel, num_heads=num_heads, head_dim=hd,
                               q_tile=q_tile, kv_tile=kv_tile)

    flops = 8 * B * T * E * E + 4 * B * T * T * E          # projections + attention
    cost = pl.CostEstimate(
        flops=int(flops),
        transcendentals=int(B * num_heads * T * T),         # exp in softmax
        bytes_accessed=int(2 * B * T * E * 4 + 4 * E * E * 2),
    )

    return pl.pallas_call(
        kernel,
        out_shape=jax.ShapeDtypeStruct((B, T, E), x.dtype),
        grid_spec=pltpu.PrefetchScalarGridSpec(
            num_scalar_prefetch=0,
            grid=(B, n_q),
            in_specs=[
                pl.BlockSpec((1, T, E), lambda b, qi: (b, 0, 0)),   # x (resident per b)
                pl.BlockSpec((E, E), lambda b, qi: (0, 0)),         # Wq^T
                pl.BlockSpec((E, E), lambda b, qi: (0, 0)),         # Wk^T
                pl.BlockSpec((E, E), lambda b, qi: (0, 0)),         # Wv^T
                pl.BlockSpec((E, E), lambda b, qi: (0, 0)),         # Wproj^T
            ],
            out_specs=pl.BlockSpec((1, q_tile, E), lambda b, qi: (b, qi, 0)),
            scratch_shapes=[
                pltpu.VMEM((num_heads, T, hd), jnp.bfloat16),       # K, head-major, per batch
                pltpu.VMEM((num_heads, T, hd), jnp.bfloat16),       # V, head-major, per batch
                pltpu.VMEM((num_heads, q_tile, hd), jnp.bfloat16),  # Q staging per tile
                pltpu.VMEM((q_tile, E), jnp.float32),               # merged head outputs (f32)
            ],
        ),
        compiler_params=pltpu.CompilerParams(
            # q-tile axis must stay sequential per batch (K/V scratch dependency).
            dimension_semantics=("parallel", "arbitrary"),
            vmem_limit_bytes=48 * 1024 * 1024,   # headroom below v7x's 64 MiB physical
        ),
        cost_estimate=cost,
    )(x, wq, wk, wv, wo)


def _reference(x, w_attn_t, w_proj_t, num_heads):
    """Pure-JAX f32 reference mirroring the PyTorch forward (no dropout, non-causal)."""
    B, T, E = x.shape
    hd = E // num_heads
    qkv = x @ w_attn_t                                       # (B, T, 3E)
    q, k, v = jnp.split(qkv, 3, axis=-1)

    def heads(t):  # (B, T, E) -> (B, H, T, hd)
        return t.reshape(B, T, num_heads, hd).transpose(0, 2, 1, 3)

    q, k, v = heads(q), heads(k), heads(v)
    s = jnp.einsum("bhqd,bhkd->bhqk", q, k) / math.sqrt(hd)
    p = jax.nn.softmax(s, axis=-1)
    y = jnp.einsum("bhqk,bhkd->bhqd", p, v)
    y = y.transpose(0, 2, 1, 3).reshape(B, T, E)
    return y @ w_proj_t


if __name__ == "__main__":
    # Small shapes consistent with the module: batch=2, seq=8, embed=32, heads=4.
    B, T, E, H = 2, 8, 32, 4

    key = jax.random.PRNGKey(0)
    kx, ka, kp = jax.random.split(key, 3)

    x = jax.random.normal(kx, (B, T, E), dtype=jnp.float32)

    # PyTorch Linear stores (out, in); the wrapper consumes the transposed (in, out) form.
    bound = 1.0 / math.sqrt(E)
    w_attn = jax.random.uniform(ka, (3 * E, E), jnp.float32, -bound, bound)
    w_proj = jax.random.uniform(kp, (E, E), jnp.float32, -bound, bound)
    w_attn_t = w_attn.T   # (E, 3E)
    w_proj_t = w_proj.T   # (E, E)

    out = causal_self_attention(x, w_attn_t, w_proj_t, num_heads=H)
    out = jax.block_until_ready(out)

    ref = _reference(x, w_attn_t, w_proj_t, H)
    assert out.shape == (B, T, E)
    # Kernel uses bf16 MXU operands with f32 accumulation -> compare loosely vs f32 ref.
    assert jnp.allclose(out, ref, atol=5e-2, rtol=5e-2), "mismatch vs reference"

    print("KERNEL_OK")
</pallas_src>

<mosaic_0001>
module attributes {stable_mosaic.version = 11 : i64} {
  func.func @_csa_kernel(%arg0: i32, %arg1: i32, %arg2: memref<1x8x32xf32, #tpu.memory_space<vmem>>, %arg3: memref<32x32xbf16, #tpu.memory_space<vmem>>, %arg4: memref<32x32xbf16, #tpu.memory_space<vmem>>, %arg5: memref<32x32xbf16, #tpu.memory_space<vmem>>, %arg6: memref<32x32xbf16, #tpu.memory_space<vmem>>, %arg7: memref<1x8x32xf32, #tpu.memory_space<vmem>>, %arg8: memref<4x8x8xbf16, #tpu.memory_space<vmem>>, %arg9: memref<4x8x8xbf16, #tpu.memory_space<vmem>>, %arg10: memref<4x8x8xbf16, #tpu.memory_space<vmem>>, %arg11: memref<8x32xf32, #tpu.memory_space<vmem>>) attributes {dimension_semantics = [#tpu.dimension_semantics<parallel>, #tpu.dimension_semantics<arbitrary>], iteration_bounds = array<i64: 2, 1>, scalar_prefetch = 0 : i64, scratch_operands = 4 : i64, tpu.core_type = #tpu.core_type<tc>, window_params = [{transform_indices = @transform_0, window_bounds = array<i64: 1, 8, 32>}, {pipeline_mode = #tpu.pipeline_mode<synchronous>, transform_indices = @transform_1, window_bounds = array<i64: 32, 32>}, {pipeline_mode = #tpu.pipeline_mode<synchronous>, transform_indices = @transform_2, window_bounds = array<i64: 32, 32>}, {pipeline_mode = #tpu.pipeline_mode<synchronous>, transform_indices = @transform_3, window_bounds = array<i64: 32, 32>}, {pipeline_mode = #tpu.pipeline_mode<synchronous>, transform_indices = @transform_4, window_bounds = array<i64: 32, 32>}, {transform_indices = @transform_5, window_bounds = array<i64: 1, 8, 32>}]} {
    %c0_i32 = arith.constant 0 : i32
    %0 = arith.cmpi eq, %arg1, %c0_i32 : i32
    %1 = arith.extui %0 : i1 to i32
    %c0_i32_0 = arith.constant 0 : i32
    %2 = arith.cmpi ne, %1, %c0_i32_0 : i32
    scf.if %2 {
      %c0_44 = arith.constant 0 : index
      %c0_45 = arith.constant 0 : index
      %c0_46 = arith.constant 0 : index
      %76 = vector.load %arg2[%c0_44, %c0_45, %c0_46] : memref<1x8x32xf32, #tpu.memory_space<vmem>>, vector<1x8x32xf32>
      %77 = vector.shape_cast %76 : vector<1x8x32xf32> to vector<8x32xf32>
      %78 = arith.truncf %77 : vector<8x32xf32> to vector<8x32xbf16>
      %c0_47 = arith.constant 0 : index
      %c0_48 = arith.constant 0 : index
      %79 = vector.load %arg4[%c0_47, %c0_48] : memref<32x32xbf16, #tpu.memory_space<vmem>>, vector<32x32xbf16>
      %cst_49 = arith.constant dense<0.000000e+00> : vector<8x32xf32>
      %80 = tpu.matmul %78, %79, %cst_49 {dimension_numbers = #tpu.dot_dimension_numbers<[1], [0], [0], [1], [0, 0, 1, 1], [], []>} : vector<8x32xbf16>, vector<32x32xbf16>, vector<8x32xf32> -> vector<8x32xf32>
      %c0_50 = arith.constant 0 : index
      %c0_51 = arith.constant 0 : index
      %81 = vector.load %arg5[%c0_50, %c0_51] : memref<32x32xbf16, #tpu.memory_space<vmem>>, vector<32x32xbf16>
      %cst_52 = arith.constant dense<0.000000e+00> : vector<8x32xf32>
      %82 = tpu.matmul %78, %81, %cst_52 {dimension_numbers = #tpu.dot_dimension_numbers<[1], [0], [0], [1], [0, 0, 1, 1], [], []>} : vector<8x32xbf16>, vector<32x32xbf16>, vector<8x32xf32> -> vector<8x32xf32>
      %83 = vector.extract_strided_slice %80 {offsets = [0, 0], sizes = [8, 8], strides = [1, 1]} : vector<8x32xf32> to vector<8x8xf32>
      %84 = arith.truncf %83 : vector<8x8xf32> to vector<8x8xbf16>
      %c0_53 = arith.constant 0 : index
      %c0_54 = arith.constant 0 : index
      %c0_55 = arith.constant 0 : index
      %85 = vector.load %arg8[%c0_53, %c0_54, %c0_55] : memref<4x8x8xbf16, #tpu.memory_space<vmem>>, vector<1x8x8xbf16>
      %86 = vector.shape_cast %85 : vector<1x8x8xbf16> to vector<8x8xbf16>
      %87 = vector.shape_cast %84 : vector<8x8xbf16> to vector<1x8x8xbf16>
      tpu.vector_store %arg8[%c0_53, %c0_54, %c0_55], %87 {strides = array<i32>} : memref<4x8x8xbf16, #tpu.memory_space<vmem>>, vector<1x8x8xbf16>,
      %88 = vector.extract_strided_slice %82 {offsets = [0, 0], sizes = [8, 8], strides = [1, 1]} : vector<8x32xf32> to vector<8x8xf32>
      %89 = arith.truncf %88 : vector<8x8xf32> to vector<8x8xbf16>
      %c0_56 = arith.constant 0 : index
      %c0_57 = arith.constant 0 : index
      %c0_58 = arith.constant 0 : index
      %90 = vector.load %arg9[%c0_56, %c0_57, %c0_58] : memref<4x8x8xbf16, #tpu.memory_space<vmem>>, vector<1x8x8xbf16>
      %91 = vector.shape_cast %90 : vector<1x8x8xbf16> to vector<8x8xbf16>
      %92 = vector.shape_cast %89 : vector<8x8xbf16> to vector<1x8x8xbf16>
      tpu.vector_store %arg9[%c0_56, %c0_57, %c0_58], %92 {strides = array<i32>} : memref<4x8x8xbf16, #tpu.memory_space<vmem>>, vector<1x8x8xbf16>,
      %93 = vector.extract_strided_slice %80 {offsets = [0, 8], sizes = [8, 8], strides = [1, 1]} : vector<8x32xf32> to vector<8x8xf32>
      %94 = arith.truncf %93 : vector<8x8xf32> to vector<8x8xbf16>
      %c1_59 = arith.constant 1 : index
      %c0_60 = arith.constant 0 : index
      %c0_61 = arith.constant 0 : index
      %95 = vector.load %arg8[%c1_59, %c0_60, %c0_61] : memref<4x8x8xbf16, #tpu.memory_space<vmem>>, vector<1x8x8xbf16>
      %96 = vector.shape_cast %95 : vector<1x8x8xbf16> to vector<8x8xbf16>
      %97 = vector.shape_cast %94 : vector<8x8xbf16> to vector<1x8x8xbf16>
      tpu.vector_store %arg8[%c1_59, %c0_60, %c0_61], %97 {strides = array<i32>} : memref<4x8x8xbf16, #tpu.memory_space<vmem>>, vector<1x8x8xbf16>,
      %98 = vector.extract_strided_slice %82 {offsets = [0, 8], sizes = [8, 8], strides = [1, 1]} : vector<8x32xf32> to vector<8x8xf32>
      %99 = arith.truncf %98 : vector<8x8xf32> to vector<8x8xbf16>
      %c1_62 = arith.constant 1 : index
      %c0_63 = arith.constant 0 : index
      %c0_64 = arith.constant 0 : index
      %100 = vector.load %arg9[%c1_62, %c0_63, %c0_64] : memref<4x8x8xbf16, #tpu.memory_space<vmem>>, vector<1x8x8xbf16>
      %101 = vector.shape_cast %100 : vector<1x8x8xbf16> to vector<8x8xbf16>
      %102 = vector.shape_cast %99 : vector<8x8xbf16> to vector<1x8x8xbf16>
      tpu.vector_store %arg9[%c1_62, %c0_63, %c0_64], %102 {strides = array<i32>} : memref<4x8x8xbf16, #tpu.memory_space<vmem>>, vector<1x8x8xbf16>,
      %103 = vector.extract_strided_slice %80 {offsets = [0, 16], sizes = [8, 8], strides = [1, 1]} : vector<8x32xf32> to vector<8x8xf32>
      %104 = arith.truncf %103 : vector<8x8xf32> to vector<8x8xbf16>
      %c2_65 = arith.constant 2 : index
      %c0_66 = arith.constant 0 : index
      %c0_67 = arith.constant 0 : index
      %105 = vector.load %arg8[%c2_65, %c0_66, %c0_67] : memref<4x8x8xbf16, #tpu.memory_space<vmem>>, vector<1x8x8xbf16>
      %106 = vector.shape_cast %105 : vector<1x8x8xbf16> to vector<8x8xbf16>
      %107 = vector.shape_cast %104 : vector<8x8xbf16> to vector<1x8x8xbf16>
      tpu.vector_store %arg8[%c2_65, %c0_66, %c0_67], %107 {strides = array<i32>} : memref<4x8x8xbf16, #tpu.memory_space<vmem>>, vector<1x8x8xbf16>,
      %108 = vector.extract_strided_slice %82 {offsets = [0, 16], sizes = [8, 8], strides = [1, 1]} : vector<8x32xf32> to vector<8x8xf32>
      %109 = arith.truncf %108 : vector<8x8xf32> to vector<8x8xbf16>
      %c2_68 = arith.constant 2 : index
      %c0_69 = arith.constant 0 : index
      %c0_70 = arith.constant 0 : index
      %110 = vector.load %arg9[%c2_68, %c0_69, %c0_70] : memref<4x8x8xbf16, #tpu.memory_space<vmem>>, vector<1x8x8xbf16>
      %111 = vector.shape_cast %110 : vector<1x8x8xbf16> to vector<8x8xbf16>
      %112 = vector.shape_cast %109 : vector<8x8xbf16> to vector<1x8x8xbf16>
      tpu.vector_store %arg9[%c2_68, %c0_69, %c0_70], %112 {strides = array<i32>} : memref<4x8x8xbf16, #tpu.memory_space<vmem>>, vector<1x8x8xbf16>,
      %113 = vector.extract_strided_slice %80 {offsets = [0, 24], sizes = [8, 8], strides = [1, 1]} : vector<8x32xf32> to vector<8x8xf32>
      %114 = arith.truncf %113 : vector<8x8xf32> to vector<8x8xbf16>
      %c3_71 = arith.constant 3 : index
      %c0_72 = arith.constant 0 : index
      %c0_73 = arith.constant 0 : index
      %115 = vector.load %arg8[%c3_71, %c0_72, %c0_73] : memref<4x8x8xbf16, #tpu.memory_space<vmem>>, vector<1x8x8xbf16>
      %116 = vector.shape_cast %115 : vector<1x8x8xbf16> to vector<8x8xbf16>
      %117 = vector.shape_cast %114 : vector<8x8xbf16> to vector<1x8x8xbf16>
      tpu.vector_store %arg8[%c3_71, %c0_72, %c0_73], %117 {strides = array<i32>} : memref<4x8x8xbf16, #tpu.memory_space<vmem>>, vector<1x8x8xbf16>,
      %118 = vector.extract_strided_slice %82 {offsets = [0, 24], sizes = [8, 8], strides = [1, 1]} : vector<8x32xf32> to vector<8x8xf32>
      %119 = arith.truncf %118 : vector<8x8xf32> to vector<8x8xbf16>
      %c3_74 = arith.constant 3 : index
      %c0_75 = arith.constant 0 : index
      %c0_76 = arith.constant 0 : index
      %120 = vector.load %arg9[%c3_74, %c0_75, %c0_76] : memref<4x8x8xbf16, #tpu.memory_space<vmem>>, vector<1x8x8xbf16>
      %121 = vector.shape_cast %120 : vector<1x8x8xbf16> to vector<8x8xbf16>
      %122 = vector.shape_cast %119 : vector<8x8xbf16> to vector<1x8x8xbf16>
      tpu.vector_store %arg9[%c3_74, %c0_75, %c0_76], %122 {strides = array<i32>} : memref<4x8x8xbf16, #tpu.memory_space<vmem>>, vector<1x8x8xbf16>,
    } else {
    }
    %c0 = arith.constant 0 : index
    %c0_1 = arith.constant 0 : index
    %c0_2 = arith.constant 0 : index
    %3 = vector.load %arg2[%c0, %c0_1, %c0_2] : memref<1x8x32xf32, #tpu.memory_space<vmem>>, vector<1x8x32xf32>
    %4 = vector.shape_cast %3 : vector<1x8x32xf32> to vector<8x32xf32>
    %5 = arith.truncf %4 : vector<8x32xf32> to vector<8x32xbf16>
    %c0_3 = arith.constant 0 : index
    %c0_4 = arith.constant 0 : index
    %6 = vector.load %arg3[%c0_3, %c0_4] : memref<32x32xbf16, #tpu.memory_space<vmem>>, vector<32x32xbf16>
    %cst = arith.constant dense<0.000000e+00> : vector<8x32xf32>
    %7 = tpu.matmul %5, %6, %cst {dimension_numbers = #tpu.dot_dimension_numbers<[1], [0], [0], [1], [0, 0, 1, 1], [], []>} : vector<8x32xbf16>, vector<32x32xbf16>, vector<8x32xf32> -> vector<8x32xf32>
    %cst_5 = arith.constant 0.353553385 : f32
    %8 = vector.broadcast %cst_5 : f32 to vector<8x32xf32>
    %9 = arith.mulf %7, %8 : vector<8x32xf32>
    %10 = vector.extract_strided_slice %9 {offsets = [0, 0], sizes = [8, 8], strides = [1, 1]} : vector<8x32xf32> to vector<8x8xf32>
    %11 = arith.truncf %10 : vector<8x8xf32> to vector<8x8xbf16>
    %c0_6 = arith.constant 0 : index
    %c0_7 = arith.constant 0 : index
    %c0_8 = arith.constant 0 : index
    %12 = vector.load %arg10[%c0_6, %c0_7, %c0_8] : memref<4x8x8xbf16, #tpu.memory_space<vmem>>, vector<1x8x8xbf16>
    %13 = vector.shape_cast %12 : vector<1x8x8xbf16> to vector<8x8xbf16>
    %14 = vector.shape_cast %11 : vector<8x8xbf16> to vector<1x8x8xbf16>
    tpu.vector_store %arg10[%c0_6, %c0_7, %c0_8], %14 {strides = array<i32>} : memref<4x8x8xbf16, #tpu.memory_space<vmem>>, vector<1x8x8xbf16>,
    %15 = vector.extract_strided_slice %9 {offsets = [0, 8], sizes = [8, 8], strides = [1, 1]} : vector<8x32xf32> to vector<8x8xf32>
    %16 = arith.truncf %15 : vector<8x8xf32> to vector<8x8xbf16>
    %c1 = arith.constant 1 : index
    %c0_9 = arith.constant 0 : index
    %c0_10 = arith.constant 0 : index
    %17 = vector.load %arg10[%c1, %c0_9, %c0_10] : memref<4x8x8xbf16, #tpu.memory_space<vmem>>, vector<1x8x8xbf16>
    %18 = vector.shape_cast %17 : vector<1x8x8xbf16> to vector<8x8xbf16>
    %19 = vector.shape_cast %16 : vector<8x8xbf16> to vector<1x8x8xbf16>
    tpu.vector_store %arg10[%c1, %c0_9, %c0_10], %19 {strides = array<i32>} : memref<4x8x8xbf16, #tpu.memory_space<vmem>>, vector<1x8x8xbf16>,
    %20 = vector.extract_strided_slice %9 {offsets = [0, 16], sizes = [8, 8], strides = [1, 1]} : vector<8x32xf32> to vector<8x8xf32>
    %21 = arith.truncf %20 : vector<8x8xf32> to vector<8x8xbf16>
    %c2 = arith.constant 2 : index
    %c0_11 = arith.constant 0 : index
    %c0_12 = arith.constant 0 : index
    %22 = vector.load %arg10[%c2, %c0_11, %c0_12] : memref<4x8x8xbf16, #tpu.memory_space<vmem>>, vector<1x8x8xbf16>
    %23 = vector.shape_cast %22 : vector<1x8x8xbf16> to vector<8x8xbf16>
    %24 = vector.shape_cast %21 : vector<8x8xbf16> to vector<1x8x8xbf16>
    tpu.vector_store %arg10[%c2, %c0_11, %c0_12], %24 {strides = array<i32>} : memref<4x8x8xbf16, #tpu.memory_space<vmem>>, vector<1x8x8xbf16>,
    %25 = vector.extract_strided_slice %9 {offsets = [0, 24], sizes = [8, 8], strides = [1, 1]} : vector<8x32xf32> to vector<8x8xf32>
    %26 = arith.truncf %25 : vector<8x8xf32> to vector<8x8xbf16>
    %c3 = arith.constant 3 : index
    %c0_13 = arith.constant 0 : index
    %c0_14 = arith.constant 0 : index
    %27 = vector.load %arg10[%c3, %c0_13, %c0_14] : memref<4x8x8xbf16, #tpu.memory_space<vmem>>, vector<1x8x8xbf16>
    %28 = vector.shape_cast %27 : vector<1x8x8xbf16> to vector<8x8xbf16>
    %29 = vector.shape_cast %26 : vector<8x8xbf16> to vector<1x8x8xbf16>
    tpu.vector_store %arg10[%c3, %c0_13, %c0_14], %29 {strides = array<i32>} : memref<4x8x8xbf16, #tpu.memory_space<vmem>>, vector<1x8x8xbf16>,
    %c0_15 = arith.constant 0 : index
    %c0_16 = arith.constant 0 : index
    %c0_17 = arith.constant 0 : index
    %30 = vector.load %arg10[%c0_15, %c0_16, %c0_17] : memref<4x8x8xbf16, #tpu.memory_space<vmem>>, vector<4x8x8xbf16>
    %cst_18 = arith.constant 0xFF800000 : f32
    %31 = vector.broadcast %cst_18 : f32 to vector<4x8x1xf32>
    %cst_19 = arith.constant 0.000000e+00 : f32
    %32 = vector.broadcast %cst_19 : f32 to vector<4x8x1xf32>
    %cst_20 = arith.constant 0.000000e+00 : f32
    %33 = vector.broadcast %cst_20 : f32 to vector<4x8x8xf32>
    %c0_21 = arith.constant 0 : index
    %c0_22 = arith.constant 0 : index
    %c0_23 = arith.constant 0 : index
    %34 = vector.load %arg8[%c0_21, %c0_22, %c0_23] : memref<4x8x8xbf16, #tpu.memory_space<vmem>>, vector<4x8x8xbf16>
    %c0_24 = arith.constant 0 : index
    %c0_25 = arith.constant 0 : index
    %c0_26 = arith.constant 0 : index
    %35 = vector.load %arg9[%c0_24, %c0_25, %c0_26] : memref<4x8x8xbf16, #tpu.memory_space<vmem>>, vector<4x8x8xbf16>
    "tpu.trace_start"() <{level = 10 : i32, message = "hqd,hkd->hqk"}> : () -> ()
    %cst_27 = arith.constant dense<0.000000e+00> : vector<4x8x8xf32>
    %36 = tpu.matmul %30, %34, %cst_27 {dimension_numbers = #tpu.dot_dimension_numbers<[2], [2], [1], [1], [0, 0, 0, 1, 1, 1], [0], [0]>} : vector<4x8x8xbf16>, vector<4x8x8xbf16>, vector<4x8x8xf32> -> vector<4x8x8xf32>
    "tpu.trace_stop"() : () -> ()
    %cst_28 = arith.constant dense<0xFF800000> : vector<4x8xf32>
    %37 = vector.multi_reduction <maximumf>, %36, %cst_28 [2] : vector<4x8x8xf32> to vector<4x8xf32>
    %38 = vector.shape_cast %37 : vector<4x8xf32> to vector<4x8x1xf32>
    %39 = arith.maximumf %31, %38 : vector<4x8x1xf32>
    %40 = arith.subf %31, %39 : vector<4x8x1xf32>
    %41 = math.exp %40 : vector<4x8x1xf32>
    %42 = vector.broadcast %39 : vector<4x8x1xf32> to vector<4x8x8xf32>
    %43 = arith.subf %36, %42 : vector<4x8x8xf32>
    %44 = math.exp %43 : vector<4x8x8xf32>
    %45 = arith.mulf %41, %32 : vector<4x8x1xf32>
    %cst_29 = arith.constant dense<0.000000e+00> : vector<4x8xf32>
    %46 = vector.multi_reduction <add>, %44, %cst_29 [2] : vector<4x8x8xf32> to vector<4x8xf32>
    %47 = vector.shape_cast %46 : vector<4x8xf32> to vector<4x8x1xf32>
    %48 = arith.addf %45, %47 : vector<4x8x1xf32>
    %49 = vector.broadcast %41 : vector<4x8x1xf32> to vector<4x8x8xf32>
    %50 = arith.mulf %49, %33 : vector<4x8x8xf32>
    %51 = arith.truncf %44 : vector<4x8x8xf32> to vector<4x8x8xbf16>
    "tpu.trace_start"() <{level = 10 : i32, message = "hqk,hkd->hqd"}> : () -> ()
    %cst_30 = arith.constant dense<0.000000e+00> : vector<4x8x8xf32>
    %52 = tpu.matmul %51, %35, %cst_30 {dimension_numbers = #tpu.dot_dimension_numbers<[2], [1], [1], [2], [0, 0, 0, 1, 1, 2], [0], [0]>} : vector<4x8x8xbf16>, vector<4x8x8xbf16>, vector<4x8x8xf32> -> vector<4x8x8xf32>
    "tpu.trace_stop"() : () -> ()
    %53 = arith.addf %50, %52 : vector<4x8x8xf32>
    %54 = tpu.reciprocal %48 {approx = true} : vector<4x8x1xf32> -> vector<4x8x1xf32>
    %55 = vector.broadcast %54 : vector<4x8x1xf32> to vector<4x8x8xf32>
    %56 = arith.mulf %53, %55 : vector<4x8x8xf32>
    %57 = vector.extract_strided_slice %56 {offsets = [0, 0, 0], sizes = [1, 8, 8], strides = [1, 1, 1]} : vector<4x8x8xf32> to vector<1x8x8xf32>
    %58 = vector.shape_cast %57 : vector<1x8x8xf32> to vector<8x8xf32>
    %c0_31 = arith.constant 0 : index
    %c0_32 = arith.constant 0 : index
    %59 = vector.load %arg11[%c0_31, %c0_32] : memref<8x32xf32, #tpu.memory_space<vmem>>, vector<8x8xf32>
    tpu.vector_store %arg11[%c0_31, %c0_32], %58 {strides = array<i32>} : memref<8x32xf32, #tpu.memory_space<vmem>>, vector<8x8xf32>,
    %60 = vector.extract_strided_slice %56 {offsets = [1, 0, 0], sizes = [1, 8, 8], strides = [1, 1, 1]} : vector<4x8x8xf32> to vector<1x8x8xf32>
    %61 = vector.shape_cast %60 : vector<1x8x8xf32> to vector<8x8xf32>
    %c0_33 = arith.constant 0 : index
    %c8 = arith.constant 8 : index
    %62 = vector.load %arg11[%c0_33, %c8] : memref<8x32xf32, #tpu.memory_space<vmem>>, vector<8x8xf32>
    tpu.vector_store %arg11[%c0_33, %c8], %61 {strides = array<i32>} : memref<8x32xf32, #tpu.memory_space<vmem>>, vector<8x8xf32>,
    %63 = vector.extract_strided_slice %56 {offsets = [2, 0, 0], sizes = [1, 8, 8], strides = [1, 1, 1]} : vector<4x8x8xf32> to vector<1x8x8xf32>
    %64 = vector.shape_cast %63 : vector<1x8x8xf32> to vector<8x8xf32>
    %c0_34 = arith.constant 0 : index
    %c16 = arith.constant 16 : index
    %65 = vector.load %arg11[%c0_34, %c16] : memref<8x32xf32, #tpu.memory_space<vmem>>, vector<8x8xf32>
    tpu.vector_store %arg11[%c0_34, %c16], %64 {strides = array<i32>} : memref<8x32xf32, #tpu.memory_space<vmem>>, vector<8x8xf32>,
    %66 = vector.extract_strided_slice %56 {offsets = [3, 0, 0], sizes = [1, 8, 8], strides = [1, 1, 1]} : vector<4x8x8xf32> to vector<1x8x8xf32>
    %67 = vector.shape_cast %66 : vector<1x8x8xf32> to vector<8x8xf32>
    %c0_35 = arith.constant 0 : index
    %c24 = arith.constant 24 : index
    %68 = vector.load %arg11[%c0_35, %c24] : memref<8x32xf32, #tpu.memory_space<vmem>>, vector<8x8xf32>
    tpu.vector_store %arg11[%c0_35, %c24], %67 {strides = array<i32>} : memref<8x32xf32, #tpu.memory_space<vmem>>, vector<8x8xf32>,
    %c0_36 = arith.constant 0 : index
    %c0_37 = arith.constant 0 : index
    %69 = vector.load %arg11[%c0_36, %c0_37] : memref<8x32xf32, #tpu.memory_space<vmem>>, vector<8x32xf32>
    %70 = arith.truncf %69 : vector<8x32xf32> to vector<8x32xbf16>
    %c0_38 = arith.constant 0 : index
    %c0_39 = arith.constant 0 : index
    %71 = vector.load %arg6[%c0_38, %c0_39] : memref<32x32xbf16, #tpu.memory_space<vmem>>, vector<32x32xbf16>
    %cst_40 = arith.constant dense<0.000000e+00> : vector<8x32xf32>
    %72 = tpu.matmul %70, %71, %cst_40 {dimension_numbers = #tpu.dot_dimension_numbers<[1], [0], [0], [1], [0, 0, 1, 1], [], []>} : vector<8x32xbf16>, vector<32x32xbf16>, vector<8x32xf32> -> vector<8x32xf32>
    %c0_41 = arith.constant 0 : index
    %c0_42 = arith.constant 0 : index
    %c0_43 = arith.constant 0 : index
    %73 = vector.load %arg7[%c0_41, %c0_42, %c0_43] : memref<1x8x32xf32, #tpu.memory_space<vmem>>, vector<1x8x32xf32>
    %74 = vector.shape_cast %73 : vector<1x8x32xf32> to vector<8x32xf32>
    %75 = vector.shape_cast %72 : vector<8x32xf32> to vector<1x8x32xf32>
    tpu.vector_store %arg7[%c0_41, %c0_42, %c0_43], %75 {strides = array<i32>} : memref<1x8x32xf32, #tpu.memory_space<vmem>>, vector<1x8x32xf32>,
    return
  }
  func.func @transform_0(%arg0: i32, %arg1: i32) -> (i32, i32, i32) {
    %c0_i32 = arith.constant 0 : i32
    %c0_i32_0 = arith.constant 0 : i32
    %c0_i32_1 = arith.constant 0 : i32
    return %arg0, %c0_i32, %c0_i32_0 : i32, i32, i32
  }
  func.func @transform_1(%arg0: i32, %arg1: i32) -> (i32, i32) {
    %c0_i32 = arith.constant 0 : i32
    %c0_i32_0 = arith.constant 0 : i32
    %c0_i32_1 = arith.constant 0 : i32
    return %c0_i32, %c0_i32_0 : i32, i32
  }
  func.func @transform_2(%arg0: i32, %arg1: i32) -> (i32, i32) {
    %c0_i32 = arith.constant 0 : i32
    %c0_i32_0 = arith.constant 0 : i32
    %c0_i32_1 = arith.constant 0 : i32
    return %c0_i32, %c0_i32_0 : i32, i32
  }
  func.func @transform_3(%arg0: i32, %arg1: i32) -> (i32, i32) {
    %c0_i32 = arith.constant 0 : i32
    %c0_i32_0 = arith.constant 0 : i32
    %c0_i32_1 = arith.constant 0 : i32
    return %c0_i32, %c0_i32_0 : i32, i32
  }
  func.func @transform_4(%arg0: i32, %arg1: i32) -> (i32, i32) {
    %c0_i32 = arith.constant 0 : i32
    %c0_i32_0 = arith.constant 0 : i32
    %c0_i32_1 = arith.constant 0 : i32
    return %c0_i32, %c0_i32_0 : i32, i32
  }
  func.func @transform_5(%arg0: i32, %arg1: i32) -> (i32, i32, i32) {
    %c0_i32 = arith.constant 0 : i32
    %c0_i32_0 = arith.constant 0 : i32
    return %arg0, %arg1, %c0_i32 : i32, i32, i32
  }
}

</mosaic_0001>

<llo_original>
// kernel: tpu_custom_call.1
$region0: #{tpu_custom_call.1}
  #allocation0 [shape = 'u32[]', space=smem, size = 0x4, offset = 0x4, fixed_abs, tag = 'smem constant byte address 0x4 - core index']
  #allocation1 [shape = 'u32[144,128]{1,0:T(1,128)}', space=vmem, size = 0x12000, scoped, tag = 'internal scratch']
  #allocation2 [shape = 'bf16[4,8,8]{2,1,0:T(8,128)(2,1)}', space=vmem, size = 0x2000, scoped, tag = 'scratch operand']
  #allocation3 [shape = 'bf16[4,8,8]{2,1,0:T(8,128)(2,1)}', space=vmem, size = 0x2000, scoped, tag = 'scratch operand']
  #allocation4 [shape = 'bf16[4,8,8]{2,1,0:T(8,128)(2,1)}', space=vmem, size = 0x2000, scoped, tag = 'scratch operand']
  #allocation5 [shape = 'f32[8,32]{1,0:T(8,128)}', space=vmem, size = 0x1000, scoped, tag = 'scratch operand']
  %s0 = inlined_call_operand.hbm [shape: f32[2,8,32], index: 0, kind: input, shape index: {}]
  %s1 = inlined_call_operand.hbm [shape: bf16[32,32], index: 1, kind: input, shape index: {}]
  %s2 = inlined_call_operand.hbm [shape: bf16[32,32], index: 2, kind: input, shape index: {}]
  %s3 = inlined_call_operand.hbm [shape: bf16[32,32], index: 3, kind: input, shape index: {}]
  %s4 = inlined_call_operand.hbm [shape: bf16[32,32], index: 4, kind: input, shape index: {}]
  %s5 = inlined_call_operand.hbm [shape: f32[2,8,32], index: 5, kind: output, shape index: {}]
  %s6 = sld [smem:[#allocation0]]
  $region77: #{tpu_custom_call.1} parent=0
    _
  %s8 = ssub.s32 1, %s6
  %s9 = scalar_select 0, %s8, %s6
  $region1: #{tpu_custom_call.1} parent=0
    #allocation6 [shape = 'u8[8192]{0}', space=vmem, size = 0x2000, scoped, tag = 'input window, operand 0']
    #allocation7 [shape = 's32[2]{0}', space=sflag, size = 0x8, scoped, tag = 'scoped memory for tpu_custom_call.1']
    #allocation8 [shape = 's32[2]{0}', space=sflag, size = 0x8, scoped, tag = 'scoped memory for tpu_custom_call.1']
    #allocation9 [shape = 'u8[8192]{0}', space=vmem, size = 0x2000, scoped, tag = 'input window, operand 1, single buffered']
    #allocation10 [shape = 's32[1]{0}', space=sflag, size = 0x4, scoped, tag = 'scoped memory for tpu_custom_call.1']
    #allocation11 [shape = 'u8[8192]{0}', space=vmem, size = 0x2000, scoped, tag = 'input window, operand 2, single buffered']
    #allocation12 [shape = 'u8[8192]{0}', space=vmem, size = 0x2000, scoped, tag = 'input window, operand 3, single buffered']
    #allocation13 [shape = 's32[1]{0}', space=sflag, size = 0x4, scoped, tag = 'scoped memory for tpu_custom_call.1']
    #allocation14 [shape = 'u8[8192]{0}', space=vmem, size = 0x2000, scoped, tag = 'input window, operand 4, single buffered']
    #allocation15 [shape = 'u8[8192]{0}', space=vmem, size = 0x2000, scoped, tag = 'output window, operand 0']
    %10 = vsyncpa [#allocation7], 0
    %s11 = scalar_lea.sflag [#allocation7], 1
    %12 = vsyncpa %s11, 0
    %13 = vsyncpa [#allocation10], 0
    %14 = vsyncpa [#allocation13], 0
    %15 = vsyncpa [#allocation8], 0
    %s16 = scalar_lea.sflag [#allocation8], 1
    %17 = vsyncpa %s16, 0
    loop: start=0, step=1, limit=4
    $region2: #{tpu_custom_call.1} parent=1 // loop_pre_header
      _
    $region3: #{tpu_custom_call.1} parent=1 // loop_header
      %s19 = sphi 0, %s23
      %p20 = scmp.ge.s32.totalorder %s19, 4
      %s26 = sphi 0, %s38
      %s27 = sphi 0, %s34
      %s28 = sphi 0, %s26
      %s29 = sphi 0, %s27
      %s30 = sphi 0, %s28
      %s31 = sphi 0, %s29
      %s41 = sphi 0, %s43
      %s44 = sphi 0, %s41
      %s45 = sphi 0, %s44
      %s61 = sphi 0, %s45
      %s65 = sphi 0, %s65
      %s67 = sphi 0, %s65
      %s68 = sphi 0, %s67
      %s82 = sphi 0, %s68
      %s86 = sphi 0, %s86
      %s88 = sphi 0, %s86
      %s89 = sphi 0, %s88
      %s103 = sphi 0, %s89
      %s107 = sphi 0, %s107
      %s109 = sphi 0, %s107
      %s110 = sphi 0, %s109
      %s124 = sphi 0, %s110
      %s128 = sphi 0, %s128
      %s130 = sphi 0, %s128
      %s131 = sphi 0, %s130
      %s145 = sphi 0, %s131
      %s153 = sphi 0, %s155
      %s156 = sphi 0, %s153
      %s157 = sphi 0, %s156
      %s173 = sphi 0, %s157
    $region4: #{tpu_custom_call.1} parent=1 // loop_header_branch
      %22 = sbr.rel (%p20) target = $region8
    $region5: #{tpu_custom_call.1} parent=1 // loop_body
      %s24 = ssub.s32 %s19, 1
      %s25 = ssub.s32 %s19, 2
      %s32 = sadd.s32 1, %s27
      %p33 = scmp.ge.s32.totalorder %s32, 1
      %s34 = scalar_select %p33, 0, %s32
      %s35 = sadd.s32 1, %s26
      %s36 = scalar_select %p33, %s35, %s26
      %p37 = scmp.ge.s32.totalorder %s36, 2
      %s38 = scalar_select %p37, 0, %s36
      %s39 = ssub.s32 %s26, %s38
      %p40 = scmp.eq.s32.totalorder %s39, 0
      %s42 = sadd.s32 %s41, 1
      %s43 = scalar_select %p40, %s41, %s42
      %p46 = pneg %p40
      %p47 = scmp.eq.s32.totalorder %s19, 1
      %p48 = por %p46, %p47
      %p49 = scmp.ne.s32.totalorder %s41, %s44
      %p50 = scmp.eq.s32.totalorder %s19, 0
      %p51 = por %p49, %p50
      %p52 = scmp.ne.s32.totalorder %s41, %s44
      %p53 = scmp.eq.s32.totalorder %s24, 1
      %p54 = por %p52, %p53
      %p55 = scmp.ne.s32.totalorder %s44, %s45
      %p56 = scmp.eq.s32.totalorder %s24, 0
      %p57 = por %p55, %p56
      %p58 = scmp.ne.s32.totalorder %s44, %s45
      %p59 = scmp.eq.s32.totalorder %s25, 1
      %p60 = por %p58, %p59
      %p62 = scmp.ne.s32.totalorder %s45, %s61
      %p63 = scmp.eq.s32.totalorder %s25, 0
      %p64 = por %p62, %p63
      %s66 = sadd.s32 %s65, 1
      %p69 = scmp.eq.s32.totalorder %s19, 1
      %p70 = scmp.ne.s32.totalorder %s65, %s67
      %p71 = scmp.eq.s32.totalorder %s19, 0
      %p72 = por %p70, %p71
      %p73 = scmp.ne.s32.totalorder %s65, %s67
      %p74 = scmp.eq.s32.totalorder %s24, 1
      %p75 = por %p73, %p74
      %p76 = scmp.ne.s32.totalorder %s67, %s68
      %p77 = scmp.eq.s32.totalorder %s24, 0
      %p78 = por %p76, %p77
      %p79 = scmp.ne.s32.totalorder %s67, %s68
      %p80 = scmp.eq.s32.totalorder %s25, 1
      %p81 = por %p79, %p80
      %p83 = scmp.ne.s32.totalorder %s68, %s82
      %p84 = scmp.eq.s32.totalorder %s25, 0
      %p85 = por %p83, %p84
      %s87 = sadd.s32 %s86, 1
      %p90 = scmp.eq.s32.totalorder %s19, 1
      %p91 = scmp.ne.s32.totalorder %s86, %s88
      %p92 = scmp.eq.s32.totalorder %s19, 0
      %p93 = por %p91, %p92
      %p94 = scmp.ne.s32.totalorder %s86, %s88
      %p95 = scmp.eq.s32.totalorder %s24, 1
      %p96 = por %p94, %p95
      %p97 = scmp.ne.s32.totalorder %s88, %s89
      %p98 = scmp.eq.s32.totalorder %s24, 0
      %p99 = por %p97, %p98
      %p100 = scmp.ne.s32.totalorder %s88, %s89
      %p101 = scmp.eq.s32.totalorder %s25, 1
      %p102 = por %p100, %p101
      %p104 = scmp.ne.s32.totalorder %s89, %s103
      %p105 = scmp.eq.s32.totalorder %s25, 0
      %p106 = por %p104, %p105
      %s108 = sadd.s32 %s107, 1
      %p111 = scmp.eq.s32.totalorder %s19, 1
      %p112 = scmp.ne.s32.totalorder %s107, %s109
      %p113 = scmp.eq.s32.totalorder %s19, 0
      %p114 = por %p112, %p113
      %p115 = scmp.ne.s32.totalorder %s107, %s109
      %p116 = scmp.eq.s32.totalorder %s24, 1
      %p117 = por %p115, %p116
      %p118 = scmp.ne.s32.totalorder %s109, %s110
      %p119 = scmp.eq.s32.totalorder %s24, 0
      %p120 = por %p118, %p119
      %p121 = scmp.ne.s32.totalorder %s109, %s110
      %p122 = scmp.eq.s32.totalorder %s25, 1
      %p123 = por %p121, %p122
      %p125 = scmp.ne.s32.totalorder %s110, %s124
      %p126 = scmp.eq.s32.totalorder %s25, 0
      %p127 = por %p125, %p126
      %s129 = sadd.s32 %s128, 1
      %p132 = scmp.eq.s32.totalorder %s19, 1
      %p133 = scmp.ne.s32.totalorder %s128, %s130
      %p134 = scmp.eq.s32.totalorder %s19, 0
      %p135 = por %p133, %p134
      %p136 = scmp.ne.s32.totalorder %s128, %s130
      %p137 = scmp.eq.s32.totalorder %s24, 1
      %p138 = por %p136, %p137
      %p139 = scmp.ne.s32.totalorder %s130, %s131
      %p140 = scmp.eq.s32.totalorder %s24, 0
      %p141 = por %p139, %p140
      %p142 = scmp.ne.s32.totalorder %s130, %s131
      %p143 = scmp.eq.s32.totalorder %s25, 1
      %p144 = por %p142, %p143
      %p146 = scmp.ne.s32.totalorder %s131, %s145
      %p147 = scmp.eq.s32.totalorder %s25, 0
      %p148 = por %p146, %p147
      %s149 = ssub.s32 %s26, %s38
      %s150 = ssub.s32 %s27, %s34
      %s151 = sor.u32 %s149, %s150
      %p152 = scmp.eq.s32.totalorder %s151, 0
      %s154 = sadd.s32 %s153, 1
      %s155 = scalar_select %p152, %s153, %s154
      %p158 = pneg %p152
      %p159 = scmp.eq.s32.totalorder %s19, 1
      %p160 = por %p158, %p159
      %p161 = scmp.ne.s32.totalorder %s153, %s156
      %p162 = scmp.eq.s32.totalorder %s19, 0
      %p163 = por %p161, %p162
      %p164 = scmp.ne.s32.totalorder %s153, %s156
      %p165 = scmp.eq.s32.totalorder %s24, 1
      %p166 = por %p164, %p165
      %p167 = scmp.ne.s32.totalorder %s156, %s157
      %p168 = scmp.eq.s32.totalorder %s24, 0
      %p169 = por %p167, %p168
      %p170 = scmp.ne.s32.totalorder %s156, %s157
      %p171 = scmp.eq.s32.totalorder %s25, 1
      %p172 = por %p170, %p171
      %p174 = scmp.ne.s32.totalorder %s157, %s173
      %p175 = scmp.eq.s32.totalorder %s25, 0
      %p176 = por %p174, %p175
      %p177 = scmp.le.s32.totalorder 1, %s19
      %p178 = scmp.lt.s32.totalorder %s19, 3
      %p179 = pnand %p177, %p178
      %p180 = pneg %p179
      // Predicated region
      $region9: #{tpu_custom_call.1} parent=5 // pred_check
        _
      $region10: #{tpu_custom_call.1} parent=5 // pred_check_branch
        %182 = sbr.rel (%p179) target = $region12
      $region11: #{tpu_custom_call.1} parent=5 // pred_region
        %s183 = ssub.s32 %s19, 1
        // Predicated region
        $region13: #{tpu_custom_call.1} parent=11 // pred_check
          %p184 = pneg %p78
        $region14: #{tpu_custom_call.1} parent=11 // pred_check_branch
          %186 = sbr.rel (%p184) target = $region16
        $region15: #{tpu_custom_call.1} parent=11 // pred_region
          %s188 = ssub.s32 256, 256
          %189 = vsyncadd [#allocation10], %s188
          %s190 = sshll.u32 [#allocation9], 4
          %s191 = int_to_ptr.vmem [resolvable:$true] %s190
          %196 = dma.hbm_to_vmem [thread:$0]  %s1, 256, %s191, [#allocation10], 64, 64, 4
        $region16: #{tpu_custom_call.1} parent=11 // pred_fallthru
          _
        // Predicated region
        $region17: #{tpu_custom_call.1} parent=11 // pred_check
          %p197 = pneg %p99
        $region18: #{tpu_custom_call.1} parent=11 // pred_check_branch
          %199 = sbr.rel (%p197) target = $region20
        $region19: #{tpu_custom_call.1} parent=11 // pred_region
          %s201 = ssub.s32 256, 256
          %202 = vsyncadd [#allocation10], %s201
          %s203 = sshll.u32 [#allocation11], 4
          %s204 = int_to_ptr.vmem [resolvable:$true] %s203
          %209 = dma.hbm_to_vmem [thread:$0]  %s2, 256, %s204, [#allocation10], 64, 64, 4
        $region20: #{tpu_custom_call.1} parent=11 // pred_fallthru
          _
        // Predicated region
        $region21: #{tpu_custom_call.1} parent=11 // pred_check
          %p210 = pneg %p120
        $region22: #{tpu_custom_call.1} parent=11 // pred_check_branch
          %212 = sbr.rel (%p210) target = $region24
        $region23: #{tpu_custom_call.1} parent=11 // pred_region
          %s214 = ssub.s32 256, 256
          %215 = vsyncadd [#allocation13], %s214
          %s216 = sshll.u32 [#allocation12], 4
          %s217 = int_to_ptr.vmem [resolvable:$true] %s216
          %222 = dma.hbm_to_vmem [thread:$0]  %s3, 256, %s217, [#allocation13], 64, 64, 4
        $region24: #{tpu_custom_call.1} parent=11 // pred_fallthru
          _
        // Predicated region
        $region25: #{tpu_custom_call.1} parent=11 // pred_check
          %p223 = pneg %p141
        $region26: #{tpu_custom_call.1} parent=11 // pred_check_branch
          %225 = sbr.rel (%p223) target = $region28
        $region27: #{tpu_custom_call.1} parent=11 // pred_region
          %s227 = ssub.s32 256, 256
          %228 = vsyncadd [#allocation13], %s227
          %s229 = sshll.u32 [#allocation14], 4
          %s230 = int_to_ptr.vmem [resolvable:$true] %s229
          %235 = dma.hbm_to_vmem [thread:$0]  %s4, 256, %s230, [#allocation13], 64, 64, 4
        $region28: #{tpu_custom_call.1} parent=11 // pred_fallthru
          _
      $region12: #{tpu_custom_call.1} parent=5 // pred_fallthru
        _
      %p236 = scmp.lt.s32.totalorder %s19, 2
      // Predicated region
      $region29: #{tpu_custom_call.1} parent=5 // pred_check
        %p237 = pneg %p236
      $region30: #{tpu_custom_call.1} parent=5 // pred_check_branch
        %239 = sbr.rel (%p237) target = $region32
      $region31: #{tpu_custom_call.1} parent=5 // pred_region
        // Predicated region
        $region33: #{tpu_custom_call.1} parent=31 // pred_check
          %p240 = pneg %p51
        $region34: #{tpu_custom_call.1} parent=31 // pred_check_branch
          %242 = sbr.rel (%p240) target = $region36
        $region35: #{tpu_custom_call.1} parent=31 // pred_region
          %s243 = sand.u32 %s41, 1
          %s244 = scalar_lea.sflag [#allocation7], %s243
          %s245 = sand.u32 %s41, 1
          %s246 = smul.addr %s245, 8
          %s247 = scalar_lea.vmem [#allocation6], %s246
          %s249 = ssub.s32 128, 128
          %250 = vsyncadd %s244, %s249
          %s251 = smul.addr %s26, 128
          %s252 = scalar_lea.hbm %s0, %s251
          %s254 = sshll.u32 %s247, 4
          %s255 = int_to_ptr.vmem [resolvable:$true] %s254
          %257 = dma.hbm_to_vmem [thread:$0]  %s252, 128, %s255, %s244
        $region36: #{tpu_custom_call.1} parent=31 // pred_fallthru
          _
      $region32: #{tpu_custom_call.1} parent=5 // pred_fallthru
        _
      %p258 = scmp.le.s32.totalorder 1, %s19
      %p259 = scmp.lt.s32.totalorder %s19, 3
      %p260 = pnand %p258, %p259
      %p261 = pneg %p260
      // Predicated region
      $region37: #{tpu_custom_call.1} parent=5 // pred_check
        _
      $region38: #{tpu_custom_call.1} parent=5 // pred_check_branch
        %263 = sbr.rel (%p260) target = $region40
      $region39: #{tpu_custom_call.1} parent=5 // pred_region
        %s264 = ssub.s32 %s19, 1
        %s265 = sand.u32 %s44, 1
        %s266 = scalar_lea.sflag [#allocation7], %s265
        %s267 = sand.u32 %s44, 1
        %s268 = smul.addr %s267, 8
        %s269 = scalar_lea.vmem [#allocation6], %s268
        // Predicated region
        $region41: #{tpu_custom_call.1} parent=39 // pred_check
          %p270 = pneg %p57
        $region42: #{tpu_custom_call.1} parent=39 // pred_check_branch
          %272 = sbr.rel (%p270) target = $region44
        $region43: #{tpu_custom_call.1} parent=39 // pred_region
          %273 = dma.done %s266, 128
        $region44: #{tpu_custom_call.1} parent=39 // pred_fallthru
          _
        // Predicated region
        $region45: #{tpu_custom_call.1} parent=39 // pred_check
          %p274 = pneg %p78
        $region46: #{tpu_custom_call.1} parent=39 // pred_check_branch
          %276 = sbr.rel (%p274) target = $region48
        $region47: #{tpu_custom_call.1} parent=39 // pred_region
          %277 = dma.done [#allocation10], 256
        $region48: #{tpu_custom_call.1} parent=39 // pred_fallthru
          _
        // Predicated region
        $region49: #{tpu_custom_call.1} parent=39 // pred_check
          %p278 = pneg %p99
        $region50: #{tpu_custom_call.1} parent=39 // pred_check_branch
          %280 = sbr.rel (%p278) target = $region52
        $region51: #{tpu_custom_call.1} parent=39 // pred_region
          %281 = dma.done [#allocation10], 256
        $region52: #{tpu_custom_call.1} parent=39 // pred_fallthru
          _
        // Predicated region
        $region53: #{tpu_custom_call.1} parent=39 // pred_check
          %p282 = pneg %p120
        $region54: #{tpu_custom_call.1} parent=39 // pred_check_branch
          %284 = sbr.rel (%p282) target = $region56
        $region55: #{tpu_custom_call.1} parent=39 // pred_region
          %285 = dma.done [#allocation13], 256
        $region56: #{tpu_custom_call.1} parent=39 // pred_fallthru
          _
        // Predicated region
        $region57: #{tpu_custom_call.1} parent=39 // pred_check
          %p286 = pneg %p141
        $region58: #{tpu_custom_call.1} parent=39 // pred_check_branch
          %288 = sbr.rel (%p286) target = $region60
        $region59: #{tpu_custom_call.1} parent=39 // pred_region
          %289 = dma.done [#allocation13], 256
        $region60: #{tpu_custom_call.1} parent=39 // pred_fallthru
          _
        %s290 = sand.u32 %s44, 1
        %s291 = scalar_lea.sflag [#allocation7], %s290
        %s292 = sand.u32 %s44, 1
        %s293 = smul.addr %s292, 8
        %s294 = scalar_lea.vmem [#allocation6], %s293
        %p295 = pneg %p57
        %p296 = pneg %p54
        %p297 = pneg %p78
        %p298 = pneg %p75
        %p299 = pneg %p99
        %p300 = pneg %p96
        %p301 = pneg %p120
        %p302 = pneg %p117
        %p303 = pneg %p141
        %p304 = pneg %p138
        %p305 = pneg %p169
        %p306 = pneg %p166
        %s307 = sand.u32 %s156, 1
        %s308 = scalar_lea.sflag [#allocation8], %s307
        %s309 = sand.u32 %s156, 1
        %s310 = smul.addr %s309, 8
        %s311 = scalar_lea.vmem [#allocation15], %s310
        %p313 = scmp.eq.s32.totalorder %s29, 0
        // Predicated region
        $region61: #{tpu_custom_call.1} parent=39 // pred_check
          %p314 = pneg %p313
        $region62: #{tpu_custom_call.1} parent=39 // pred_check_branch
          %316 = sbr.rel (%p314) target = $region64
        $region63: #{tpu_custom_call.1} parent=39 // pred_region
          %v317 = vld [vmem:[%s269] sm:$0xff]
          %v318 = vpack.c.bf16 %v317, %v317
          %v319 = vld [vmem:[#allocation11] sm:$0xf]
          %v320 = vld [vmem:[#allocation11 + $0x4] sm:$0xf]
          %v321 = vld [vmem:[#allocation11 + $0x8] sm:$0xf]
          %v322 = vld [vmem:[#allocation11 + $0xc] sm:$0xf]
          %v327 = vunpack.c.l.b16 %v319
          %v328 = vunpack.c.l.b16 %v320
          %v329 = vunpack.c.l.b16 %v321
          %v330 = vunpack.c.l.b16 %v322
          %v331 = vpack.c.b16 %v328, %v327
          %v332 = vpack.c.b16 %v330, %v329
          %vm335 = vcmask 261120
          %v337 = vsel %vm335, %v318, 0
          %339 = vmatprep.subr.bf16.mxu0 0
          %340 = vmatpush1.bf16.msra.mxu0 %v331
          %341 = vmatprep.subr.bf16.mxu0 0
          %342 = vmatpush1.bf16.msra.mxu0 %v332
          %343 = vmatprep.subr.bf16.mxu0 0
          %344 = vmatpush1.bf16.msra.mxu0 0
          %345 = vmatprep.subr.bf16.mxu0 0
          %346 = vmatpush1.bf16.msra.mxu0 0
          %347 = vmatprep.subr.bf16.mxu0 0
          %348 = vmatpush1.bf16.msra.mxu0 0
          %349 = vmatprep.subr.bf16.mxu0 0
          %350 = vmatpush1.bf16.msra.mxu0 0
          %351 = vmatprep.subr.bf16.mxu0 0
          %352 = vmatpush1.bf16.msra.mxu0 0
          %353 = vmatprep.subr.bf16.mxu0 0
          %354 = vmatpush1.bf16.msra.mxu0 0
          %355 = vmatprep.subr.bf16.mxu0 0
          %356 = vmatpush1.bf16.msra.mxu0 0
          %357 = vmatprep.subr.bf16.mxu0 0
          %358 = vmatpush1.bf16.msra.mxu0 0
          %359 = vmatprep.subr.bf16.mxu0 0
          %360 = vmatpush1.bf16.msra.mxu0 0
          %361 = vmatprep.subr.bf16.mxu0 0
          %362 = vmatpush1.bf16.msra.mxu0 0
          %363 = vmatprep.subr.bf16.mxu0 0
          %364 = vmatpush1.bf16.msra.mxu0 0
          %365 = vmatprep.subr.bf16.mxu0 0
          %366 = vmatpush1.bf16.msra.mxu0 0
          %367 = vmatprep.subr.bf16.mxu0 0
          %368 = vmatpush1.bf16.msra.mxu0 0
          %369 = vmatprep.subr.bf16.mxu0 0
          %370 = vmatpush1.bf16.msra.mxu0 0
          %371 = vmatprep.mubr.bf16.mxu0 0
          %372 = vmatmul.mubr.bf16.gmra.mrb[0].mxu0 %v337
          %v373 = vpop.f32.mrb[0].mxu0
          %v374 = vadd.f32 0.0, %v373
          %v375 = vpop.f32.mrb[0].mxu0
          %v376 = vpop.f32.mrb[0].mxu0
          %v377 = vpop.f32.mrb[0].mxu0
          %378 = vdwg.mxu0
          %v379 = vld [vmem:[#allocation12] sm:$0xf]
          %v380 = vld [vmem:[#allocation12 + $0x4] sm:$0xf]
          %v381 = vld [vmem:[#allocation12 + $0x8] sm:$0xf]
          %v382 = vld [vmem:[#allocation12 + $0xc] sm:$0xf]
          %v387 = vunpack.c.l.b16 %v379
          %v388 = vunpack.c.l.b16 %v380
          %v389 = vunpack.c.l.b16 %v381
          %v390 = vunpack.c.l.b16 %v382
          %v391 = vpack.c.b16 %v388, %v387
          %v392 = vpack.c.b16 %v390, %v389
          %395 = vmatprep.subr.bf16.mxu0 0
          %396 = vmatpush1.bf16.msra.mxu0 %v391
          %397 = vmatprep.subr.bf16.mxu0 0
          %398 = vmatpush1.bf16.msra.mxu0 %v392
          %399 = vmatprep.subr.bf16.mxu0 0
          %400 = vmatpush1.bf16.msra.mxu0 0
          %401 = vmatprep.subr.bf16.mxu0 0
          %402 = vmatpush1.bf16.msra.mxu0 0
          %403 = vmatprep.subr.bf16.mxu0 0
          %404 = vmatpush1.bf16.msra.mxu0 0
          %405 = vmatprep.subr.bf16.mxu0 0
          %406 = vmatpush1.bf16.msra.mxu0 0
          %407 = vmatprep.subr.bf16.mxu0 0
          %408 = vmatpush1.bf16.msra.mxu0 0
          %409 = vmatprep.subr.bf16.mxu0 0
          %410 = vmatpush1.bf16.msra.mxu0 0
          %411 = vmatprep.subr.bf16.mxu0 0
          %412 = vmatpush1.bf16.msra.mxu0 0
          %413 = vmatprep.subr.bf16.mxu0 0
          %414 = vmatpush1.bf16.msra.mxu0 0
          %415 = vmatprep.subr.bf16.mxu0 0
          %416 = vmatpush1.bf16.msra.mxu0 0
          %417 = vmatprep.subr.bf16.mxu0 0
          %418 = vmatpush1.bf16.msra.mxu0 0
          %419 = vmatprep.subr.bf16.mxu0 0
          %420 = vmatpush1.bf16.msra.mxu0 0
          %421 = vmatprep.subr.bf16.mxu0 0
          %422 = vmatpush1.bf16.msra.mxu0 0
          %423 = vmatprep.subr.bf16.mxu0 0
          %424 = vmatpush1.bf16.msra.mxu0 0
          %425 = vmatprep.subr.bf16.mxu0 0
          %426 = vmatpush1.bf16.msra.mxu0 0
          %427 = vmatprep.mubr.bf16.mxu0 0
          %428 = vmatmul.mubr.bf16.gmra.mrb[0].mxu0 %v337
          %v429 = vpop.f32.mrb[0].mxu0
          %v430 = vadd.f32 0.0, %v429
          %v431 = vpop.f32.mrb[0].mxu0
          %v432 = vpop.f32.mrb[0].mxu0
          %v433 = vpop.f32.mrb[0].mxu0
          %434 = vdwg.mxu0
          %v435 = vpack.c.bf16 %v374, %v374
          %vm436 = vcmask 60416
          %437 = vst.msk [vmem:[#allocation2] sm:$0xf] %vm436, %v435
          %v438 = vpack.c.bf16 %v430, %v430
          %439 = vst.msk [vmem:[#allocation3] sm:$0xf] %vm436, %v438
          %v441 = vunpack.c.l.b16 %v435
          %v442 = vpack.c.b16 %v441, %v441
          %443 = vrot.lane.b32.xlu0 %v442, 120
          %v444 = vpop.permute.xlu0 %443
          %s446 = scalar_lea.vmem [#allocation2], 4
          %447 = vst.msk [vmem:[%s446] sm:$0xf] %vm436, %v444
          %v449 = vunpack.c.l.b16 %v438
          %v450 = vpack.c.b16 %v449, %v449
          %451 = vrot.lane.b32.xlu0 %v450, 120
          %v452 = vpop.permute.xlu0 %451
          %s454 = scalar_lea.vmem [#allocation3], 4
          %455 = vst.msk [vmem:[%s454] sm:$0xf] %vm436, %v452
          %456 = vrot.lane.b32.xlu0 %v442, 112
          %v457 = vpop.permute.xlu0 %456
          %s459 = scalar_lea.vmem [#allocation2], 8
          %460 = vst.msk [vmem:[%s459] sm:$0xf] %vm436, %v457
          %461 = vrot.lane.b32.xlu0 %v450, 112
          %v462 = vpop.permute.xlu0 %461
          %s464 = scalar_lea.vmem [#allocation3], 8
          %465 = vst.msk [vmem:[%s464] sm:$0xf] %vm436, %v462
          %466 = vrot.lane.b32.xlu0 %v442, 104
          %v467 = vpop.permute.xlu0 %466
          %s469 = scalar_lea.vmem [#allocation2], 12
          %470 = vst.msk [vmem:[%s469] sm:$0xf] %vm436, %v467
          %471 = vrot.lane.b32.xlu0 %v450, 104
          %v472 = vpop.permute.xlu0 %471
          %s474 = scalar_lea.vmem [#allocation3], 12
          %475 = vst.msk [vmem:[%s474] sm:$0xf] %vm436, %v472
        $region64: #{tpu_custom_call.1} parent=39 // pred_fallthru
          _
        %v476 = vld [vmem:[%s269] sm:$0xff]
        %v477 = vpack.c.bf16 %v476, %v476
        %v478 = vld [vmem:[#allocation9] sm:$0xf]
        %v479 = vld [vmem:[#allocation9 + $0x4] sm:$0xf]
        %v480 = vld [vmem:[#allocation9 + $0x8] sm:$0xf]
        %v481 = vld [vmem:[#allocation9 + $0xc] sm:$0xf]
        %v486 = vunpack.c.l.b16 %v478
        %v487 = vunpack.c.l.b16 %v479
        %v488 = vunpack.c.l.b16 %v480
        %v489 = vunpack.c.l.b16 %v481
        %v490 = vpack.c.b16 %v487, %v486
        %v491 = vpack.c.b16 %v489, %v488
        %vm494 = vcmask 261120
        %v496 = vsel %vm494, %v477, 0
        %498 = vmatprep.subr.bf16.mxu0 0
        %499 = vmatpush1.bf16.msra.mxu0 %v490
        %500 = vmatprep.subr.bf16.mxu0 0
        %501 = vmatpush1.bf16.msra.mxu0 %v491
        %502 = vmatprep.subr.bf16.mxu0 0
        %503 = vmatpush1.bf16.msra.mxu0 0
        %504 = vmatprep.subr.bf16.mxu0 0
        %505 = vmatpush1.bf16.msra.mxu0 0
        %506 = vmatprep.subr.bf16.mxu0 0
        %507 = vmatpush1.bf16.msra.mxu0 0
        %508 = vmatprep.subr.bf16.mxu0 0
        %509 = vmatpush1.bf16.msra.mxu0 0
        %510 = vmatprep.subr.bf16.mxu0 0
        %511 = vmatpush1.bf16.msra.mxu0 0
        %512 = vmatprep.subr.bf16.mxu0 0
        %513 = vmatpush1.bf16.msra.mxu0 0
        %514 = vmatprep.subr.bf16.mxu0 0
        %515 = vmatpush1.bf16.msra.mxu0 0
        %516 = vmatprep.subr.bf16.mxu0 0
        %517 = vmatpush1.bf16.msra.mxu0 0
        %518 = vmatprep.subr.bf16.mxu0 0
        %519 = vmatpush1.bf16.msra.mxu0 0
        %520 = vmatprep.subr.bf16.mxu0 0
        %521 = vmatpush1.bf16.msra.mxu0 0
        %522 = vmatprep.subr.bf16.mxu0 0
        %523 = vmatpush1.bf16.msra.mxu0 0
        %524 = vmatprep.subr.bf16.mxu0 0
        %525 = vmatpush1.bf16.msra.mxu0 0
        %526 = vmatprep.subr.bf16.mxu0 0
        %527 = vmatpush1.bf16.msra.mxu0 0
        %528 = vmatprep.subr.bf16.mxu0 0
        %529 = vmatpush1.bf16.msra.mxu0 0
        %530 = vmatprep.mubr.bf16.mxu0 0
        %531 = vmatmul.mubr.bf16.gmra.mrb[0].mxu0 %v496
        %v532 = vpop.f32.mrb[0].mxu0
        %v533 = vadd.f32 0.0, %v532
        %v534 = vpop.f32.mrb[0].mxu0
        %v535 = vpop.f32.mrb[0].mxu0
        %v536 = vpop.f32.mrb[0].mxu0
        %537 = vdwg.mxu0
        %v538 = vmul.f32 %v533, 0.35355338
        %v539 = vpack.c.bf16 %v538, %v538
        %vm540 = vcmask 60416
        %541 = vst.msk [vmem:[#allocation4] sm:$0xf] %vm540, %v539
        %v543 = vunpack.c.l.b16 %v539
        %v544 = vpack.c.b16 %v543, %v543
        %545 = vrot.lane.b32.xlu0 %v544, 120
        %v546 = vpop.permute.xlu0 %545
        %s548 = scalar_lea.vmem [#allocation4], 4
        %549 = vst.msk [vmem:[%s548] sm:$0xf] %vm540, %v546
        %550 = vrot.lane.b32.xlu0 %v544, 112
        %v551 = vpop.permute.xlu0 %550
        %s553 = scalar_lea.vmem [#allocation4], 8
        %554 = vst.msk [vmem:[%s553] sm:$0xf] %vm540, %v551
        %555 = vrot.lane.b32.xlu0 %v544, 104
        %v556 = vpop.permute.xlu0 %555
        %s558 = scalar_lea.vmem [#allocation4], 12
        %559 = vst.msk [vmem:[%s558] sm:$0xf] %vm540, %v556
        %v560 = vld [vmem:[#allocation4] sm:$0xf]
        %v561 = vld [vmem:[#allocation4 + $0x4] sm:$0xf]
        %v562 = vld [vmem:[#allocation4 + $0x8] sm:$0xf]
        %v563 = vld [vmem:[#allocation4 + $0xc] sm:$0xf]
        %v564 = vld [vmem:[#allocation2] sm:$0xf]
        %v565 = vld [vmem:[#allocation2 + $0x4] sm:$0xf]
        %v566 = vld [vmem:[#allocation2 + $0x8] sm:$0xf]
        %v567 = vld [vmem:[#allocation2 + $0xc] sm:$0xf]
        %v568 = vld [vmem:[#allocation3] sm:$0xf]
        %v569 = vld [vmem:[#allocation3 + $0x4] sm:$0xf]
        %v570 = vld [vmem:[#allocation3 + $0x8] sm:$0xf]
        %v571 = vld [vmem:[#allocation3 + $0xc] sm:$0xf]
        %vm572 = vcmask 64512
        %v574 = vsel %vm572, %v560, 0
        %v577 = vsel %vm572, %v564, 0
        %579 = vmatprep.subr.bf16.mxu0 0
        %580 = vmatpush1.bf16.xpose.msra.mxu0 %v577
        %581 = vmatprep.subr.bf16.mxu0 0
        %582 = vmatpush1.bf16.xpose.msra.mxu0 0
        %583 = vmatprep.subr.bf16.mxu0 0
        %584 = vmatpush1.bf16.xpose.msra.mxu0 0
        %585 = vmatprep.subr.bf16.mxu0 0
        %586 = vmatpush1.bf16.xpose.msra.mxu0 0
        %587 = vmatprep.subr.bf16.mxu0 0
        %588 = vmatpush1.bf16.xpose.msra.mxu0 0
        %589 = vmatprep.subr.bf16.mxu0 0
        %590 = vmatpush1.bf16.xpose.msra.mxu0 0
        %591 = vmatprep.subr.bf16.mxu0 0
        %592 = vmatpush1.bf16.xpose.msra.mxu0 0
        %593 = vmatprep.subr.bf16.mxu0 0
        %594 = vmatpush1.bf16.xpose.msra.mxu0 0
        %595 = vmatprep.subr.bf16.mxu0 0
        %596 = vmatpush1.bf16.xpose.msra.mxu0 0
        %597 = vmatprep.subr.bf16.mxu0 0
        %598 = vmatpush1.bf16.xpose.msra.mxu0 0
        %599 = vmatprep.subr.bf16.mxu0 0
        %600 = vmatpush1.bf16.xpose.msra.mxu0 0
        %601 = vmatprep.subr.bf16.mxu0 0
        %602 = vmatpush1.bf16.xpose.msra.mxu0 0
        %603 = vmatprep.subr.bf16.mxu0 0
        %604 = vmatpush1.bf16.xpose.msra.mxu0 0
        %605 = vmatprep.subr.bf16.mxu0 0
        %606 = vmatpush1.bf16.xpose.msra.mxu0 0
        %607 = vmatprep.subr.bf16.mxu0 0
        %608 = vmatpush1.bf16.xpose.msra.mxu0 0
        %609 = vmatprep.subr.bf16.mxu0 0
        %610 = vmatpush1.bf16.xpose.msra.mxu0 0
        %611 = vmatprep.mubr.bf16.mxu0 0
        %612 = vmatmul.mubr.bf16.gmra.mrb[0].mxu0 %v574
        %v613 = vpop.f32.mrb[0].mxu0
        %v614 = vadd.f32 0.0, %v613
        %v615 = vpop.f32.mrb[0].mxu0
        %v616 = vpop.f32.mrb[0].mxu0
        %v617 = vpop.f32.mrb[0].mxu0
        %618 = vdwg.mxu0
        %v620 = vsel %vm572, %v561, 0
        %v623 = vsel %vm572, %v565, 0
        %625 = vmatprep.subr.bf16.mxu0 0
        %626 = vmatpush1.bf16.xpose.msra.mxu0 %v623
        %627 = vmatprep.subr.bf16.mxu0 0
        %628 = vmatpush1.bf16.xpose.msra.mxu0 0
        %629 = vmatprep.subr.bf16.mxu0 0
        %630 = vmatpush1.bf16.xpose.msra.mxu0 0
        %631 = vmatprep.subr.bf16.mxu0 0
        %632 = vmatpush1.bf16.xpose.msra.mxu0 0
        %633 = vmatprep.subr.bf16.mxu0 0
        %634 = vmatpush1.bf16.xpose.msra.mxu0 0
        %635 = vmatprep.subr.bf16.mxu0 0
        %636 = vmatpush1.bf16.xpose.msra.mxu0 0
        %637 = vmatprep.subr.bf16.mxu0 0
        %638 = vmatpush1.bf16.xpose.msra.mxu0 0
        %639 = vmatprep.subr.bf16.mxu0 0
        %640 = vmatpush1.bf16.xpose.msra.mxu0 0
        %641 = vmatprep.subr.bf16.mxu0 0
        %642 = vmatpush1.bf16.xpose.msra.mxu0 0
        %643 = vmatprep.subr.bf16.mxu0 0
        %644 = vmatpush1.bf16.xpose.msra.mxu0 0
        %645 = vmatprep.subr.bf16.mxu0 0
        %646 = vmatpush1.bf16.xpose.msra.mxu0 0
        %647 = vmatprep.subr.bf16.mxu0 0
        %648 = vmatpush1.bf16.xpose.msra.mxu0 0
        %649 = vmatprep.subr.bf16.mxu0 0
        %650 = vmatpush1.bf16.xpose.msra.mxu0 0
        %651 = vmatprep.subr.bf16.mxu0 0
        %652 = vmatpush1.bf16.xpose.msra.mxu0 0
        %653 = vmatprep.subr.bf16.mxu0 0
        %654 = vmatpush1.bf16.xpose.msra.mxu0 0
        %655 = vmatprep.subr.bf16.mxu0 0
        %656 = vmatpush1.bf16.xpose.msra.mxu0 0
        %657 = vmatprep.mubr.bf16.mxu0 0
        %658 = vmatmul.mubr.bf16.gmra.mrb[0].mxu0 %v620
        %v659 = vpop.f32.mrb[0].mxu0
        %v660 = vadd.f32 0.0, %v659
        %v661 = vpop.f32.mrb[0].mxu0
        %v662 = vpop.f32.mrb[0].mxu0
        %v663 = vpop.f32.mrb[0].mxu0
        %664 = vdwg.mxu0
        %v666 = vsel %vm572, %v562, 0
        %v669 = vsel %vm572, %v566, 0
        %671 = vmatprep.subr.bf16.mxu0 0
        %672 = vmatpush1.bf16.xpose.msra.mxu0 %v669
        %673 = vmatprep.subr.bf16.mxu0 0
        %674 = vmatpush1.bf16.xpose.msra.mxu0 0
        %675 = vmatprep.subr.bf16.mxu0 0
        %676 = vmatpush1.bf16.xpose.msra.mxu0 0
        %677 = vmatprep.subr.bf16.mxu0 0
        %678 = vmatpush1.bf16.xpose.msra.mxu0 0
        %679 = vmatprep.subr.bf16.mxu0 0
        %680 = vmatpush1.bf16.xpose.msra.mxu0 0
        %681 = vmatprep.subr.bf16.mxu0 0
        %682 = vmatpush1.bf16.xpose.msra.mxu0 0
        %683 = vmatprep.subr.bf16.mxu0 0
        %684 = vmatpush1.bf16.xpose.msra.mxu0 0
        %685 = vmatprep.subr.bf16.mxu0 0
        %686 = vmatpush1.bf16.xpose.msra.mxu0 0
        %687 = vmatprep.subr.bf16.mxu0 0
        %688 = vmatpush1.bf16.xpose.msra.mxu0 0
        %689 = vmatprep.subr.bf16.mxu0 0
        %690 = vmatpush1.bf16.xpose.msra.mxu0 0
        %691 = vmatprep.subr.bf16.mxu0 0
        %692 = vmatpush1.bf16.xpose.msra.mxu0 0
        %693 = vmatprep.subr.bf16.mxu0 0
        %694 = vmatpush1.bf16.xpose.msra.mxu0 0
        %695 = vmatprep.subr.bf16.mxu0 0
        %696 = vmatpush1.bf16.xpose.msra.mxu0 0
        %697 = vmatprep.subr.bf16.mxu0 0
        %698 = vmatpush1.bf16.xpose.msra.mxu0 0
        %699 = vmatprep.subr.bf16.mxu0 0
        %700 = vmatpush1.bf16.xpose.msra.mxu0 0
        %701 = vmatprep.subr.bf16.mxu0 0
        %702 = vmatpush1.bf16.xpose.msra.mxu0 0
        %703 = vmatprep.mubr.bf16.mxu0 0
        %704 = vmatmul.mubr.bf16.gmra.mrb[0].mxu0 %v666
        %v705 = vpop.f32.mrb[0].mxu0
        %v706 = vadd.f32 0.0, %v705
        %v707 = vpop.f32.mrb[0].mxu0
        %v708 = vpop.f32.mrb[0].mxu0
        %v709 = vpop.f32.mrb[0].mxu0
        %710 = vdwg.mxu0
        %v712 = vsel %vm572, %v563, 0
        %v715 = vsel %vm572, %v567, 0
        %717 = vmatprep.subr.bf16.mxu0 0
        %718 = vmatpush1.bf16.xpose.msra.mxu0 %v715
        %719 = vmatprep.subr.bf16.mxu0 0
        %720 = vmatpush1.bf16.xpose.msra.mxu0 0
        %721 = vmatprep.subr.bf16.mxu0 0
        %722 = vmatpush1.bf16.xpose.msra.mxu0 0
        %723 = vmatprep.subr.bf16.mxu0 0
        %724 = vmatpush1.bf16.xpose.msra.mxu0 0
        %725 = vmatprep.subr.bf16.mxu0 0
        %726 = vmatpush1.bf16.xpose.msra.mxu0 0
        %727 = vmatprep.subr.bf16.mxu0 0
        %728 = vmatpush1.bf16.xpose.msra.mxu0 0
        %729 = vmatprep.subr.bf16.mxu0 0
        %730 = vmatpush1.bf16.xpose.msra.mxu0 0
        %731 = vmatprep.subr.bf16.mxu0 0
        %732 = vmatpush1.bf16.xpose.msra.mxu0 0
        %733 = vmatprep.subr.bf16.mxu0 0
        %734 = vmatpush1.bf16.xpose.msra.mxu0 0
        %735 = vmatprep.subr.bf16.mxu0 0
        %736 = vmatpush1.bf16.xpose.msra.mxu0 0
        %737 = vmatprep.subr.bf16.mxu0 0
        %738 = vmatpush1.bf16.xpose.msra.mxu0 0
        %739 = vmatprep.subr.bf16.mxu0 0
        %740 = vmatpush1.bf16.xpose.msra.mxu0 0
        %741 = vmatprep.subr.bf16.mxu0 0
        %742 = vmatpush1.bf16.xpose.msra.mxu0 0
        %743 = vmatprep.subr.bf16.mxu0 0
        %744 = vmatpush1.bf16.xpose.msra.mxu0 0
        %745 = vmatprep.subr.bf16.mxu0 0
        %746 = vmatpush1.bf16.xpose.msra.mxu0 0
        %747 = vmatprep.subr.bf16.mxu0 0
        %748 = vmatpush1.bf16.xpose.msra.mxu0 0
        %749 = vmatprep.mubr.bf16.mxu0 0
        %750 = vmatmul.mubr.bf16.gmra.mrb[0].mxu0 %v712
        %v751 = vpop.f32.mrb[0].mxu0
        %v752 = vadd.f32 0.0, %v751
        %v753 = vpop.f32.mrb[0].mxu0
        %v754 = vpop.f32.mrb[0].mxu0
        %v755 = vpop.f32.mrb[0].mxu0
        %756 = vdwg.mxu0
        %v757 = vsel %vm572, %v614, -inf
        %758 = vmax.xlane.f32.xlu0 %v757
        %v759 = vpop.xlane.xlu0 %758
        %v760 = vsel %vm572, %v660, -inf
        %761 = vmax.xlane.f32.xlu0 %v760
        %v762 = vpop.xlane.xlu0 %761
        %v763 = vsel %vm572, %v706, -inf
        %764 = vmax.xlane.f32.xlu0 %v763
        %v765 = vpop.xlane.xlu0 %764
        %v766 = vsel %vm572, %v752, -inf
        %767 = vmax.xlane.f32.xlu0 %v766
        %v768 = vpop.xlane.xlu0 %767
        %v769 = vsub.f32 -inf, %v759
        %v770 = vsub.f32 -inf, %v762
        %v771 = vsub.f32 -inf, %v765
        %v772 = vsub.f32 -inf, %v768
        %v773 = vmul.f32 %v769, 1.442695
        %v774 = vpow.pop %v773
        %v775 = vmul.f32 %v770, 1.442695
        %v776 = vpow.pop %v775
        %v777 = vmul.f32 %v771, 1.442695
        %v778 = vpow.pop %v777
        %v779 = vmul.f32 %v772, 1.442695
        %v780 = vpow.pop %v779
        %v781 = vsub.f32 %v614, %v759
        %v782 = vsub.f32 %v660, %v762
        %v783 = vsub.f32 %v706, %v765
        %v784 = vsub.f32 %v752, %v768
        %v785 = vmul.f32 %v781, 1.442695
        %v786 = vpow.pop %v785
        %v787 = vmul.f32 %v782, 1.442695
        %v788 = vpow.pop %v787
        %v789 = vmul.f32 %v783, 1.442695
        %v790 = vpow.pop %v789
        %v791 = vmul.f32 %v784, 1.442695
        %v792 = vpow.pop %v791
        %v793 = vmul.f32 %v774, 0.0
        %v794 = vmul.f32 %v776, 0.0
        %v795 = vmul.f32 %v778, 0.0
        %v796 = vmul.f32 %v780, 0.0
        %v797 = vsel %vm572, %v786, 0.0
        %798 = vadd.xlane.f32.xlu0 %v797
        %v799 = vpop.xlane.xlu0 %798
        %v800 = vsel %vm572, %v788, 0.0
        %801 = vadd.xlane.f32.xlu0 %v800
        %v802 = vpop.xlane.xlu0 %801
        %v803 = vsel %vm572, %v790, 0.0
        %804 = vadd.xlane.f32.xlu0 %v803
        %v805 = vpop.xlane.xlu0 %804
        %v806 = vsel %vm572, %v792, 0.0
        %807 = vadd.xlane.f32.xlu0 %v806
        %v808 = vpop.xlane.xlu0 %807
        %v809 = vadd.f32 %v793, %v799
        %v810 = vadd.f32 %v794, %v802
        %v811 = vadd.f32 %v795, %v805
        %v812 = vadd.f32 %v796, %v808
        %v813 = vpack.c.bf16 %v786, %v786
        %v814 = vpack.c.bf16 %v788, %v788
        %v815 = vpack.c.bf16 %v790, %v790
        %v816 = vpack.c.bf16 %v792, %v792
        %v818 = vsel %vm572, %v813, 0
        %vm820 = vcmask 1043456
        %v822 = vsel %vm820, %v568, 0
        %824 = vmatprep.subr.bf16.mxu0 0
        %825 = vmatpush1.bf16.msra.mxu0 %v822
        %826 = vmatprep.subr.bf16.mxu0 0
        %827 = vmatpush1.bf16.msra.mxu0 0
        %828 = vmatprep.subr.bf16.mxu0 0
        %829 = vmatpush1.bf16.msra.mxu0 0
        %830 = vmatprep.subr.bf16.mxu0 0
        %831 = vmatpush1.bf16.msra.mxu0 0
        %832 = vmatprep.subr.bf16.mxu0 0
        %833 = vmatpush1.bf16.msra.mxu0 0
        %834 = vmatprep.subr.bf16.mxu0 0
        %835 = vmatpush1.bf16.msra.mxu0 0
        %836 = vmatprep.subr.bf16.mxu0 0
        %837 = vmatpush1.bf16.msra.mxu0 0
        %838 = vmatprep.subr.bf16.mxu0 0
        %839 = vmatpush1.bf16.msra.mxu0 0
        %840 = vmatprep.subr.bf16.mxu0 0
        %841 = vmatpush1.bf16.msra.mxu0 0
        %842 = vmatprep.subr.bf16.mxu0 0
        %843 = vmatpush1.bf16.msra.mxu0 0
        %844 = vmatprep.subr.bf16.mxu0 0
        %845 = vmatpush1.bf16.msra.mxu0 0
        %846 = vmatprep.subr.bf16.mxu0 0
        %847 = vmatpush1.bf16.msra.mxu0 0
        %848 = vmatprep.subr.bf16.mxu0 0
        %849 = vmatpush1.bf16.msra.mxu0 0
        %850 = vmatprep.subr.bf16.mxu0 0
        %851 = vmatpush1.bf16.msra.mxu0 0
        %852 = vmatprep.subr.bf16.mxu0 0
        %853 = vmatpush1.bf16.msra.mxu0 0
        %854 = vmatprep.subr.bf16.mxu0 0
        %855 = vmatpush1.bf16.msra.mxu0 0
        %856 = vmatprep.mubr.bf16.mxu0 0
        %857 = vmatmul.mubr.bf16.gmra.mrb[0].mxu0 %v818
        %v858 = vpop.f32.mrb[0].mxu0
        %v859 = vadd.f32 0.0, %v858
        %v860 = vpop.f32.mrb[0].mxu0
        %v861 = vpop.f32.mrb[0].mxu0
        %v862 = vpop.f32.mrb[0].mxu0
        %863 = vdwg.mxu0
        %v865 = vsel %vm572, %v814, 0
        %v868 = vsel %vm820, %v569, 0
        %870 = vmatprep.subr.bf16.mxu0 0
        %871 = vmatpush1.bf16.msra.mxu0 %v868
        %872 = vmatprep.subr.bf16.mxu0 0
        %873 = vmatpush1.bf16.msra.mxu0 0
        %874 = vmatprep.subr.bf16.mxu0 0
        %875 = vmatpush1.bf16.msra.mxu0 0
        %876 = vmatprep.subr.bf16.mxu0 0
        %877 = vmatpush1.bf16.msra.mxu0 0
        %878 = vmatprep.subr.bf16.mxu0 0
        %879 = vmatpush1.bf16.msra.mxu0 0
        %880 = vmatprep.subr.bf16.mxu0 0
        %881 = vmatpush1.bf16.msra.mxu0 0
        %882 = vmatprep.subr.bf16.mxu0 0
        %883 = vmatpush1.bf16.msra.mxu0 0
        %884 = vmatprep.subr.bf16.mxu0 0
        %885 = vmatpush1.bf16.msra.mxu0 0
        %886 = vmatprep.subr.bf16.mxu0 0
        %887 = vmatpush1.bf16.msra.mxu0 0
        %888 = vmatprep.subr.bf16.mxu0 0
        %889 = vmatpush1.bf16.msra.mxu0 0
        %890 = vmatprep.subr.bf16.mxu0 0
        %891 = vmatpush1.bf16.msra.mxu0 0
        %892 = vmatprep.subr.bf16.mxu0 0
        %893 = vmatpush1.bf16.msra.mxu0 0
        %894 = vmatprep.subr.bf16.mxu0 0
        %895 = vmatpush1.bf16.msra.mxu0 0
        %896 = vmatprep.subr.bf16.mxu0 0
        %897 = vmatpush1.bf16.msra.mxu0 0
        %898 = vmatprep.subr.bf16.mxu0 0
        %899 = vmatpush1.bf16.msra.mxu0 0
        %900 = vmatprep.subr.bf16.mxu0 0
        %901 = vmatpush1.bf16.msra.mxu0 0
        %902 = vmatprep.mubr.bf16.mxu0 0
        %903 = vmatmul.mubr.bf16.gmra.mrb[0].mxu0 %v865
        %v904 = vpop.f32.mrb[0].mxu0
        %v905 = vadd.f32 0.0, %v904
        %v906 = vpop.f32.mrb[0].mxu0
        %v907 = vpop.f32.mrb[0].mxu0
        %v908 = vpop.f32.mrb[0].mxu0
        %909 = vdwg.mxu0
        %v911 = vsel %vm572, %v815, 0
        %v914 = vsel %vm820, %v570, 0
        %916 = vmatprep.subr.bf16.mxu0 0
        %917 = vmatpush1.bf16.msra.mxu0 %v914
        %918 = vmatprep.subr.bf16.mxu0 0
        %919 = vmatpush1.bf16.msra.mxu0 0
        %920 = vmatprep.subr.bf16.mxu0 0
        %921 = vmatpush1.bf16.msra.mxu0 0
        %922 = vmatprep.subr.bf16.mxu0 0
        %923 = vmatpush1.bf16.msra.mxu0 0
        %924 = vmatprep.subr.bf16.mxu0 0
        %925 = vmatpush1.bf16.msra.mxu0 0
        %926 = vmatprep.subr.bf16.mxu0 0
        %927 = vmatpush1.bf16.msra.mxu0 0
        %928 = vmatprep.subr.bf16.mxu0 0
        %929 = vmatpush1.bf16.msra.mxu0 0
        %930 = vmatprep.subr.bf16.mxu0 0
        %931 = vmatpush1.bf16.msra.mxu0 0
        %932 = vmatprep.subr.bf16.mxu0 0
        %933 = vmatpush1.bf16.msra.mxu0 0
        %934 = vmatprep.subr.bf16.mxu0 0
        %935 = vmatpush1.bf16.msra.mxu0 0
        %936 = vmatprep.subr.bf16.mxu0 0
        %937 = vmatpush1.bf16.msra.mxu0 0
        %938 = vmatprep.subr.bf16.mxu0 0
        %939 = vmatpush1.bf16.msra.mxu0 0
        %940 = vmatprep.subr.bf16.mxu0 0
        %941 = vmatpush1.bf16.msra.mxu0 0
        %942 = vmatprep.subr.bf16.mxu0 0
        %943 = vmatpush1.bf16.msra.mxu0 0
        %944 = vmatprep.subr.bf16.mxu0 0
        %945 = vmatpush1.bf16.msra.mxu0 0
        %946 = vmatprep.subr.bf16.mxu0 0
        %947 = vmatpush1.bf16.msra.mxu0 0
        %948 = vmatprep.mubr.bf16.mxu0 0
        %949 = vmatmul.mubr.bf16.gmra.mrb[0].mxu0 %v911
        %v950 = vpop.f32.mrb[0].mxu0
        %v951 = vadd.f32 0.0, %v950
        %v952 = vpop.f32.mrb[0].mxu0
        %v953 = vpop.f32.mrb[0].mxu0
        %v954 = vpop.f32.mrb[0].mxu0
        %955 = vdwg.mxu0
        %v957 = vsel %vm572, %v816, 0
        %v960 = vsel %vm820, %v571, 0
        %962 = vmatprep.subr.bf16.mxu0 0
        %963 = vmatpush1.bf16.msra.mxu0 %v960
        %964 = vmatprep.subr.bf16.mxu0 0
        %965 = vmatpush1.bf16.msra.mxu0 0
        %966 = vmatprep.subr.bf16.mxu0 0
        %967 = vmatpush1.bf16.msra.mxu0 0
        %968 = vmatprep.subr.bf16.mxu0 0
        %969 = vmatpush1.bf16.msra.mxu0 0
        %970 = vmatprep.subr.bf16.mxu0 0
        %971 = vmatpush1.bf16.msra.mxu0 0
        %972 = vmatprep.subr.bf16.mxu0 0
        %973 = vmatpush1.bf16.msra.mxu0 0
        %974 = vmatprep.subr.bf16.mxu0 0
        %975 = vmatpush1.bf16.msra.mxu0 0
        %976 = vmatprep.subr.bf16.mxu0 0
        %977 = vmatpush1.bf16.msra.mxu0 0
        %978 = vmatprep.subr.bf16.mxu0 0
        %979 = vmatpush1.bf16.msra.mxu0 0
        %980 = vmatprep.subr.bf16.mxu0 0
        %981 = vmatpush1.bf16.msra.mxu0 0
        %982 = vmatprep.subr.bf16.mxu0 0
        %983 = vmatpush1.bf16.msra.mxu0 0
        %984 = vmatprep.subr.bf16.mxu0 0
        %985 = vmatpush1.bf16.msra.mxu0 0
        %986 = vmatprep.subr.bf16.mxu0 0
        %987 = vmatpush1.bf16.msra.mxu0 0
        %988 = vmatprep.subr.bf16.mxu0 0
        %989 = vmatpush1.bf16.msra.mxu0 0
        %990 = vmatprep.subr.bf16.mxu0 0
        %991 = vmatpush1.bf16.msra.mxu0 0
        %992 = vmatprep.subr.bf16.mxu0 0
        %993 = vmatpush1.bf16.msra.mxu0 0
        %994 = vmatprep.mubr.bf16.mxu0 0
        %995 = vmatmul.mubr.bf16.gmra.mrb[0].mxu0 %v957
        %v996 = vpop.f32.mrb[0].mxu0
        %v997 = vadd.f32 0.0, %v996
        %v998 = vpop.f32.mrb[0].mxu0
        %v999 = vpop.f32.mrb[0].mxu0
        %v1000 = vpop.f32.mrb[0].mxu0
        %1001 = vdwg.mxu0
        %v1002 = vadd.f32 %v793, %v859
        %v1003 = vadd.f32 %v794, %v905
        %v1004 = vadd.f32 %v795, %v951
        %v1005 = vadd.f32 %v796, %v997
        %v1006 = vrcp.pop %v809
        %v1007 = vrcp.pop %v810
        %v1008 = vrcp.pop %v811
        %v1009 = vrcp.pop %v812
        %v1010 = vmul.f32 %v1002, %v1006
        %v1011 = vmul.f32 %v1003, %v1007
        %v1012 = vmul.f32 %v1004, %v1008
        %v1013 = vmul.f32 %v1005, %v1009
        %1014 = vst.msk [vmem:[#allocation5] sm:$0xff] %vm572, %v1010
        %1016 = vrot.lane.b32.xlu0 %v1011, 8
        %v1017 = vpop.permute.xlu0 %1016
        %vm1019 = vcmask 130112
        %1020 = vst.msk [vmem:[#allocation5] sm:$0xff] %vm1019, %v1017
        %1022 = vrot.lane.b32.xlu0 %v1012, 16
        %v1023 = vpop.permute.xlu0 %1022
        %vm1025 = vcmask 195712
        %1026 = vst.msk [vmem:[#allocation5] sm:$0xff] %vm1025, %v1023
        %1028 = vrot.lane.b32.xlu0 %v1013, 24
        %v1029 = vpop.permute.xlu0 %1028
        %vm1031 = vcmask 261312
        %1032 = vst.msk [vmem:[#allocation5] sm:$0xff] %vm1031, %v1029
        %v1033 = vld [vmem:[#allocation5] sm:$0xff]
        %v1034 = vpack.c.bf16 %v1033, %v1033
        %v1035 = vld [vmem:[#allocation14] sm:$0xf]
        %v1036 = vld [vmem:[#allocation14 + $0x4] sm:$0xf]
        %v1037 = vld [vmem:[#allocation14 + $0x8] sm:$0xf]
        %v1038 = vld [vmem:[#allocation14 + $0xc] sm:$0xf]
        %v1043 = vunpack.c.l.b16 %v1035
        %v1044 = vunpack.c.l.b16 %v1036
        %v1045 = vunpack.c.l.b16 %v1037
        %v1046 = vunpack.c.l.b16 %v1038
        %v1047 = vpack.c.b16 %v1044, %v1043
        %v1048 = vpack.c.b16 %v1046, %v1045
        %v1052 = vsel %vm494, %v1034, 0
        %1054 = vmatprep.subr.bf16.mxu0 0
        %1055 = vmatpush1.bf16.msra.mxu0 %v1047
        %1056 = vmatprep.subr.bf16.mxu0 0
        %1057 = vmatpush1.bf16.msra.mxu0 %v1048
        %1058 = vmatprep.subr.bf16.mxu0 0
        %1059 = vmatpush1.bf16.msra.mxu0 0
        %1060 = vmatprep.subr.bf16.mxu0 0
        %1061 = vmatpush1.bf16.msra.mxu0 0
        %1062 = vmatprep.subr.bf16.mxu0 0
        %1063 = vmatpush1.bf16.msra.mxu0 0
        %1064 = vmatprep.subr.bf16.mxu0 0
        %1065 = vmatpush1.bf16.msra.mxu0 0
        %1066 = vmatprep.subr.bf16.mxu0 0
        %1067 = vmatpush1.bf16.msra.mxu0 0
        %1068 = vmatprep.subr.bf16.mxu0 0
        %1069 = vmatpush1.bf16.msra.mxu0 0
        %1070 = vmatprep.subr.bf16.mxu0 0
        %1071 = vmatpush1.bf16.msra.mxu0 0
        %1072 = vmatprep.subr.bf16.mxu0 0
        %1073 = vmatpush1.bf16.msra.mxu0 0
        %1074 = vmatprep.subr.bf16.mxu0 0
        %1075 = vmatpush1.bf16.msra.mxu0 0
        %1076 = vmatprep.subr.bf16.mxu0 0
        %1077 = vmatpush1.bf16.msra.mxu0 0
        %1078 = vmatprep.subr.bf16.mxu0 0
        %1079 = vmatpush1.bf16.msra.mxu0 0
        %1080 = vmatprep.subr.bf16.mxu0 0
        %1081 = vmatpush1.bf16.msra.mxu0 0
        %1082 = vmatprep.subr.bf16.mxu0 0
        %1083 = vmatpush1.bf16.msra.mxu0 0
        %1084 = vmatprep.subr.bf16.mxu0 0
        %1085 = vmatpush1.bf16.msra.mxu0 0
        %1086 = vmatprep.mubr.bf16.mxu0 0
        %1087 = vmatmul.mubr.bf16.gmra.mrb[0].mxu0 %v1052
        %v1088 = vpop.f32.mrb[0].mxu0
        %v1089 = vadd.f32 0.0, %v1088
        %v1090 = vpop.f32.mrb[0].mxu0
        %v1091 = vpop.f32.mrb[0].mxu0
        %v1092 = vpop.f32.mrb[0].mxu0
        %1093 = vdwg.mxu0
        %1094 = vst.msk [vmem:[%s311] sm:$0xff] %vm494, %v1089
        %s1095 = sand.u32 %s156, 1
        %s1096 = scalar_lea.sflag [#allocation8], %s1095
        %s1097 = sand.u32 %s156, 1
        %s1098 = smul.addr %s1097, 8
        %s1099 = scalar_lea.vmem [#allocation15], %s1098
        // Predicated region
        $region65: #{tpu_custom_call.1} parent=39 // pred_check
          %p1100 = pneg %p166
        $region66: #{tpu_custom_call.1} parent=39 // pred_check_branch
          %1102 = sbr.rel (%p1100) target = $region68
        $region67: #{tpu_custom_call.1} parent=39 // pred_region
          %s1104 = ssub.s32 128, 128
          %1105 = vsyncadd %s1096, %s1104
          %s1106 = sadd.s32 %s29, %s28
          %s1107 = smul.addr %s1106, 128
          %s1108 = scalar_lea.hbm %s5, %s1107
          %s1110 = sshll.u32 %s1099, 4
          %s1111 = int_to_ptr.vmem [resolvable:$true] %s1110
          %1113 = dma.vmem_to_hbm [thread:$0]  %s1111, 128, %s1108, %s1096
        $region68: #{tpu_custom_call.1} parent=39 // pred_fallthru
          _
      $region40: #{tpu_custom_call.1} parent=5 // pred_fallthru
        _
      %p1114 = scmp.le.s32.totalorder 2, %s19
      // Predicated region
      $region69: #{tpu_custom_call.1} parent=5 // pred_check
        %p1115 = pneg %p1114
      $region70: #{tpu_custom_call.1} parent=5 // pred_check_branch
        %1117 = sbr.rel (%p1115) target = $region72
      $region71: #{tpu_custom_call.1} parent=5 // pred_region
        %s1118 = ssub.s32 %s19, 2
        // Predicated region
        $region73: #{tpu_custom_call.1} parent=71 // pred_check
          %p1119 = pneg %p172
        $region74: #{tpu_custom_call.1} parent=71 // pred_check_branch
          %1121 = sbr.rel (%p1119) target = $region76
        $region75: #{tpu_custom_call.1} parent=71 // pred_region
          %s1122 = sand.u32 %s157, 1
          %s1123 = scalar_lea.sflag [#allocation8], %s1122
          %s1124 = sand.u32 %s157, 1
          %s1125 = smul.addr %s1124, 8
          %s1126 = scalar_lea.vmem [#allocation15], %s1125
          %1127 = dma.done %s1123, 128
        $region76: #{tpu_custom_call.1} parent=71 // pred_fallthru
          _
      $region72: #{tpu_custom_call.1} parent=5 // pred_fallthru
        _
    $region6: #{tpu_custom_call.1} parent=1 // loop_footer
      %s23 = sadd.s32 1, %s19
    $region7: #{tpu_custom_call.1} parent=1 // loop_footer_branch
      %18 = sbr.rel target = $region3
    $region8: #{tpu_custom_call.1} parent=1 // loop_exit
      _
    %1128 = vsyncpa [#allocation7], 1
    %s1129 = scalar_lea.sflag [#allocation7], 1
    %1130 = vsyncpa %s1129, 1
    %1131 = vsyncpa [#allocation10], 1
    %1132 = vsyncpa [#allocation13], 1
    %1133 = vsyncpa [#allocation8], 1
    %s1134 = scalar_lea.sflag [#allocation8], 1
    %1135 = vsyncpa %s1134, 1

</llo_original>
